<compile_context>
chip_gen: v6e
topology: v6e:2x2x1
jax: 0.10.0
libtpu: 0.0.40
codegen_flags: <defaults>
</compile_context>

<pallas_src>
import jax
import jax.numpy as jnp
from jax.experimental import pallas as pl
from jax.experimental.pallas import tpu as pltpu


def _vmem():
    return pl.BlockSpec(memory_space=pltpu.MemorySpace.VMEM)


# --------------------------- fused GNN layer kernel ---------------------------
def make_gnn_kernel(num_nodes, num_edges, out_dim, heads):
    N, E, D, H = num_nodes, num_edges, out_dim, heads

    def kernel(x_ref, e_ref, src_row_ref, src_col_ref, tgt_row_ref, tgt_col_ref,
               we_ref, wh_ref, wattn_ref, wih_ref, whh_ref, bih_ref, bhh_ref,
               emb_ref, msg_ref):
        x = x_ref[...]                                                   # [N, node_dim]

        # ---- one-hot scatter / gather operators built in-kernel from indices ----
        ids_ne = jax.lax.broadcasted_iota(jnp.int32, (N, E), 0)         # row = node id
        ids_en = jax.lax.broadcasted_iota(jnp.int32, (E, N), 1)         # col = node id
        scat_src = (ids_ne == src_row_ref[...]).astype(jnp.float32)     # [N, E]
        scat_tgt = (ids_ne == tgt_row_ref[...]).astype(jnp.float32)     # [N, E]
        gath_src = (ids_en == src_col_ref[...]).astype(jnp.float32)     # [E, N]
        gath_tgt = (ids_en == tgt_col_ref[...]).astype(jnp.float32)     # [E, N]

        # ---- MessagePassingLayer + LeakyReLU(0.01) ----
        # gather and projection fused: x[src] @ Whu  ==  gath_src @ (x @ Whu)
        ph = jnp.dot(x, wh_ref[...], preferred_element_type=jnp.float32)   # [N, 2D]
        m = (jnp.dot(e_ref[...], we_ref[...], preferred_element_type=jnp.float32)
             + jnp.dot(gath_src, ph[:, 0:D], preferred_element_type=jnp.float32)
             + jnp.dot(gath_tgt, ph[:, D:2 * D], preferred_element_type=jnp.float32))
        m = jnp.where(m > 0.0, m, 0.01 * m)                              # [E, D]
        msg_ref[...] = m

        # ---- attention: softmax over edges sharing a source node (per head/channel) ----
        logits = jnp.dot(m, wattn_ref[...], preferred_element_type=jnp.float32)  # [E, H*D]
        # global per-column max is constant within every source segment, hence
        # exactly equivalent to the per-segment max for softmax stabilisation.
        c = jnp.max(logits, axis=0, keepdims=True)                       # [1, H*D]
        w = jnp.exp(logits - c)                                          # [E, H*D]
        seg_sum = jnp.dot(scat_src, w, preferred_element_type=jnp.float32)     # [N, H*D]
        sum_g = jnp.dot(gath_src, seg_sum, preferred_element_type=jnp.float32)  # [E, H*D]
        probs = w * pl.reciprocal(sum_g, approx=True)                    # [E, H*D]

        # ---- head-averaged weighted aggregation onto target nodes ----
        # mean_h( scatter_add(probs_h * m, tgt) ) == scatter_add((sum_h probs_h) * m, tgt) / H
        probs_sum = probs[:, 0:D]
        for h in range(1, H):
            probs_sum = probs_sum + probs[:, h * D:(h + 1) * D]
        agg = jnp.dot(scat_tgt, probs_sum * m,
                      preferred_element_type=jnp.float32) * (1.0 / H)    # [N, D]

        # ---- GRUCell(input=x, hidden=agg) ----
        gi = jnp.dot(x, wih_ref[...], preferred_element_type=jnp.float32) + bih_ref[...]
        gh = jnp.dot(agg, whh_ref[...], preferred_element_type=jnp.float32) + bhh_ref[...]
        r = jax.nn.sigmoid(gi[:, 0:D] + gh[:, 0:D])
        z = jax.nn.sigmoid(gi[:, D:2 * D] + gh[:, D:2 * D])
        n = jnp.tanh(gi[:, 2 * D:3 * D] + r * gh[:, 2 * D:3 * D])
        emb_ref[...] = (1.0 - z) * n + z * agg

    return kernel


# -------------------------------- forward glue --------------------------------
def gnn_layer_forward(params, x, edge_index, edge_attr, batch):
    # `batch` is sorted and GRUCell is row-wise, so torch's to_dense_batch +
    # per-graph GRUCell + concat is exactly a per-node GRUCell in node order.
    del batch
    N = x.shape[0]
    E = edge_attr.shape[0]
    D = params['We_t'].shape[1]
    H = params['Wattn_t'].shape[1] // D
    src = edge_index[0].astype(jnp.int32)
    tgt = edge_index[1].astype(jnp.int32)

    emb, msg = pl.pallas_call(
        make_gnn_kernel(N, E, D, H),
        out_shape=(jax.ShapeDtypeStruct((N, D), jnp.float32),
                   jax.ShapeDtypeStruct((E, D), jnp.float32)),
        in_specs=[_vmem()] * 13,
        out_specs=(_vmem(), _vmem()),
    )(x, edge_attr,
      src[None, :], src[:, None], tgt[None, :], tgt[:, None],
      params['We_t'], params['Wh_t'], params['Wattn_t'],
      params['Wih_t'], params['Whh_t'], params['b_ih'], params['b_hh'])
    return emb, msg


# ------------------------ deterministic parameter init ------------------------
def init_params(key, node_dim, out_dim, edge_dim, heads):
    ks = jax.random.split(key, 7)

    def u(k, shape, fan_in):
        bound = (1.0 / fan_in) ** 0.5
        return jax.random.uniform(k, shape, jnp.float32, -bound, bound)

    return {
        'We_t':    u(ks[0], (edge_dim, out_dim), edge_dim),
        'Wh_t':    u(ks[1], (node_dim, 2 * out_dim), node_dim),   # [Whu | Whw]
        'Wattn_t': u(ks[2], (out_dim, out_dim * heads), out_dim),
        'Wih_t':   u(ks[3], (node_dim, 3 * out_dim), out_dim),
        'Whh_t':   u(ks[4], (out_dim, 3 * out_dim), out_dim),
        'b_ih':    u(ks[5], (1, 3 * out_dim), out_dim),
        'b_hh':    u(ks[6], (1, 3 * out_dim), out_dim),
    }


# ----------------------------- pure-JAX reference -----------------------------
def reference_forward(params, x, edge_index, edge_attr):
    N = x.shape[0]
    D = params['We_t'].shape[1]
    H = params['Wattn_t'].shape[1] // D
    src, tgt = edge_index[0], edge_index[1]

    m = (edge_attr @ params['We_t']
         + x[src] @ params['Wh_t'][:, :D]
         + x[tgt] @ params['Wh_t'][:, D:])
    m = jnp.where(m > 0, m, 0.01 * m)

    logits = (m @ params['Wattn_t']).reshape(m.shape[0], H, D)
    seg_max = jax.ops.segment_max(logits, src, num_segments=N)
    w = jnp.exp(logits - seg_max[src])
    seg_sum = jax.ops.segment_sum(w, src, num_segments=N)
    probs = w / seg_sum[src]

    weighted = probs * m[:, None, :]
    agg = jax.ops.segment_sum(weighted, tgt, num_segments=N).mean(axis=1)

    gi = x @ params['Wih_t'] + params['b_ih']
    gh = agg @ params['Whh_t'] + params['b_hh']
    r = jax.nn.sigmoid(gi[:, :D] + gh[:, :D])
    z = jax.nn.sigmoid(gi[:, D:2 * D] + gh[:, D:2 * D])
    n = jnp.tanh(gi[:, 2 * D:] + r * gh[:, 2 * D:])
    emb = (1 - z) * n + z * agg
    return emb, m


if __name__ == "__main__":
    node_dim, out_dim, edge_dim, heads = 32, 32, 16, 4
    num_nodes, num_edges = 16, 32

    key = jax.random.PRNGKey(0)
    ks = jax.random.split(key, 8)

    x = jax.random.normal(ks[0], (num_nodes, node_dim), jnp.float32)
    edge_attr = jax.random.normal(ks[1], (num_edges, edge_dim), jnp.float32)

    # two graphs of 8 nodes each; `batch` is sorted
    batch = jnp.concatenate([jnp.zeros(8, jnp.int32), jnp.ones(8, jnp.int32)])
    src0 = jax.random.randint(ks[2], (num_edges // 2,), 0, 8)
    tgt0 = jax.random.randint(ks[3], (num_edges // 2,), 0, 8)
    src1 = jax.random.randint(ks[4], (num_edges // 2,), 8, 16)
    tgt1 = jax.random.randint(ks[5], (num_edges // 2,), 8, 16)
    edge_index = jnp.stack([jnp.concatenate([src0, src1]),
                            jnp.concatenate([tgt0, tgt1])]).astype(jnp.int32)

    params = init_params(ks[6], node_dim, out_dim, edge_dim, heads)

    fwd = jax.jit(gnn_layer_forward)
    embeddings, messages = fwd(params, x, edge_index, edge_attr, batch)
    jax.block_until_ready((embeddings, messages))

    ref_emb, ref_msg = reference_forward(params, x, edge_index, edge_attr)
    assert embeddings.shape == (num_nodes, out_dim)
    assert messages.shape == (num_edges, out_dim)
    # tolerances are set to absorb TPU default-precision (bf16) matmuls in the
    # pure-JAX reference and the approx reciprocal in the kernel.
    assert jnp.allclose(messages, ref_msg, rtol=1e-2, atol=1e-2)
    assert jnp.allclose(embeddings, ref_emb, rtol=1e-2, atol=1e-2)

    print("KERNEL_OK")
</pallas_src>

<mosaic_0001>
module attributes {stable_mosaic.version = 11 : i64} {
  func.func @kernel(%arg0: memref<16x32xf32, #tpu.memory_space<vmem>>, %arg1: memref<32x16xf32, #tpu.memory_space<vmem>>, %arg2: memref<1x32xi32, #tpu.memory_space<vmem>>, %arg3: memref<32x1xi32, #tpu.memory_space<vmem>>, %arg4: memref<1x32xi32, #tpu.memory_space<vmem>>, %arg5: memref<32x1xi32, #tpu.memory_space<vmem>>, %arg6: memref<16x32xf32, #tpu.memory_space<vmem>>, %arg7: memref<32x64xf32, #tpu.memory_space<vmem>>, %arg8: memref<32x128xf32, #tpu.memory_space<vmem>>, %arg9: memref<32x96xf32, #tpu.memory_space<vmem>>, %arg10: memref<32x96xf32, #tpu.memory_space<vmem>>, %arg11: memref<1x96xf32, #tpu.memory_space<vmem>>, %arg12: memref<1x96xf32, #tpu.memory_space<vmem>>, %arg13: memref<16x32xf32, #tpu.memory_space<vmem>>, %arg14: memref<32x32xf32, #tpu.memory_space<vmem>>) attributes {dimension_semantics = [], scalar_prefetch = 0 : i64, scratch_operands = 0 : i64, tpu.core_type = #tpu.core_type<tc>} {
    %c0 = arith.constant 0 : index
    %c0_0 = arith.constant 0 : index
    %0 = vector.load %arg0[%c0, %c0_0] : memref<16x32xf32, #tpu.memory_space<vmem>>, vector<16x32xf32>
    %1 = tpu.iota {dimensions = array<i32: 0>} : vector<16x32xi32>
    %2 = tpu.iota {dimensions = array<i32: 1>} : vector<32x16xi32>
    %c0_1 = arith.constant 0 : index
    %c0_2 = arith.constant 0 : index
    %3 = vector.load %arg2[%c0_1, %c0_2] : memref<1x32xi32, #tpu.memory_space<vmem>>, vector<1x32xi32>
    %4 = vector.broadcast %3 : vector<1x32xi32> to vector<16x32xi32>
    %5 = arith.cmpi eq, %1, %4 : vector<16x32xi32>
    %6 = arith.extui %5 : vector<16x32xi1> to vector<16x32xi32>
    %7 = arith.sitofp %6 : vector<16x32xi32> to vector<16x32xf32>
    %c0_3 = arith.constant 0 : index
    %c0_4 = arith.constant 0 : index
    %8 = vector.load %arg4[%c0_3, %c0_4] : memref<1x32xi32, #tpu.memory_space<vmem>>, vector<1x32xi32>
    %9 = vector.broadcast %8 : vector<1x32xi32> to vector<16x32xi32>
    %10 = arith.cmpi eq, %1, %9 : vector<16x32xi32>
    %11 = arith.extui %10 : vector<16x32xi1> to vector<16x32xi32>
    %12 = arith.sitofp %11 : vector<16x32xi32> to vector<16x32xf32>
    %c0_5 = arith.constant 0 : index
    %c0_6 = arith.constant 0 : index
    %13 = vector.load %arg3[%c0_5, %c0_6] : memref<32x1xi32, #tpu.memory_space<vmem>>, vector<32x1xi32>
    %14 = vector.broadcast %13 : vector<32x1xi32> to vector<32x16xi32>
    %15 = arith.cmpi eq, %2, %14 : vector<32x16xi32>
    %16 = arith.extui %15 : vector<32x16xi1> to vector<32x16xi32>
    %17 = arith.sitofp %16 : vector<32x16xi32> to vector<32x16xf32>
    %c0_7 = arith.constant 0 : index
    %c0_8 = arith.constant 0 : index
    %18 = vector.load %arg5[%c0_7, %c0_8] : memref<32x1xi32, #tpu.memory_space<vmem>>, vector<32x1xi32>
    %19 = vector.broadcast %18 : vector<32x1xi32> to vector<32x16xi32>
    %20 = arith.cmpi eq, %2, %19 : vector<32x16xi32>
    %21 = arith.extui %20 : vector<32x16xi1> to vector<32x16xi32>
    %22 = arith.sitofp %21 : vector<32x16xi32> to vector<32x16xf32>
    %c0_9 = arith.constant 0 : index
    %c0_10 = arith.constant 0 : index
    %23 = vector.load %arg7[%c0_9, %c0_10] : memref<32x64xf32, #tpu.memory_space<vmem>>, vector<32x64xf32>
    %cst = arith.constant dense<0.000000e+00> : vector<16x64xf32>
    %24 = tpu.matmul %0, %23, %cst {dimension_numbers = #tpu.dot_dimension_numbers<[1], [0], [0], [1], [0, 0, 1, 1], [], []>} : vector<16x32xf32>, vector<32x64xf32>, vector<16x64xf32> -> vector<16x64xf32>
    %c0_11 = arith.constant 0 : index
    %c0_12 = arith.constant 0 : index
    %25 = vector.load %arg1[%c0_11, %c0_12] : memref<32x16xf32, #tpu.memory_space<vmem>>, vector<32x16xf32>
    %c0_13 = arith.constant 0 : index
    %c0_14 = arith.constant 0 : index
    %26 = vector.load %arg6[%c0_13, %c0_14] : memref<16x32xf32, #tpu.memory_space<vmem>>, vector<16x32xf32>
    %cst_15 = arith.constant dense<0.000000e+00> : vector<32x32xf32>
    %27 = tpu.matmul %25, %26, %cst_15 {dimension_numbers = #tpu.dot_dimension_numbers<[1], [0], [0], [1], [0, 0, 1, 1], [], []>} : vector<32x16xf32>, vector<16x32xf32>, vector<32x32xf32> -> vector<32x32xf32>
    %28 = vector.extract_strided_slice %24 {offsets = [0, 0], sizes = [16, 32], strides = [1, 1]} : vector<16x64xf32> to vector<16x32xf32>
    %cst_16 = arith.constant dense<0.000000e+00> : vector<32x32xf32>
    %29 = tpu.matmul %17, %28, %cst_16 {dimension_numbers = #tpu.dot_dimension_numbers<[1], [0], [0], [1], [0, 0, 1, 1], [], []>} : vector<32x16xf32>, vector<16x32xf32>, vector<32x32xf32> -> vector<32x32xf32>
    %30 = arith.addf %27, %29 : vector<32x32xf32>
    %31 = vector.extract_strided_slice %24 {offsets = [0, 32], sizes = [16, 32], strides = [1, 1]} : vector<16x64xf32> to vector<16x32xf32>
    %cst_17 = arith.constant dense<0.000000e+00> : vector<32x32xf32>
    %32 = tpu.matmul %22, %31, %cst_17 {dimension_numbers = #tpu.dot_dimension_numbers<[1], [0], [0], [1], [0, 0, 1, 1], [], []>} : vector<32x16xf32>, vector<16x32xf32>, vector<32x32xf32> -> vector<32x32xf32>
    %33 = arith.addf %30, %32 : vector<32x32xf32>
    %cst_18 = arith.constant 0.000000e+00 : f32
    %34 = vector.broadcast %cst_18 : f32 to vector<32x32xf32>
    %35 = arith.cmpf ogt, %33, %34 : vector<32x32xf32>
    %cst_19 = arith.constant 0.00999999977 : f32
    %36 = vector.broadcast %cst_19 : f32 to vector<32x32xf32>
    %37 = arith.mulf %36, %33 : vector<32x32xf32>
    %38 = arith.select %35, %33, %37 : vector<32x32xi1>, vector<32x32xf32>
    %c0_20 = arith.constant 0 : index
    %c0_21 = arith.constant 0 : index
    %39 = vector.load %arg14[%c0_20, %c0_21] : memref<32x32xf32, #tpu.memory_space<vmem>>, vector<32x32xf32>
    tpu.vector_store %arg14[%c0_20, %c0_21], %38 {strides = array<i32>} : memref<32x32xf32, #tpu.memory_space<vmem>>, vector<32x32xf32>,
    %c0_22 = arith.constant 0 : index
    %c0_23 = arith.constant 0 : index
    %40 = vector.load %arg8[%c0_22, %c0_23] : memref<32x128xf32, #tpu.memory_space<vmem>>, vector<32x128xf32>
    %cst_24 = arith.constant dense<0.000000e+00> : vector<32x128xf32>
    %41 = tpu.matmul %38, %40, %cst_24 {dimension_numbers = #tpu.dot_dimension_numbers<[1], [0], [0], [1], [0, 0, 1, 1], [], []>} : vector<32x32xf32>, vector<32x128xf32>, vector<32x128xf32> -> vector<32x128xf32>
    %cst_25 = arith.constant dense<0xFF800000> : vector<128xf32>
    %42 = vector.multi_reduction <maximumf>, %41, %cst_25 [0] : vector<32x128xf32> to vector<128xf32>
    %43 = vector.shape_cast %42 : vector<128xf32> to vector<1x128xf32>
    %44 = vector.broadcast %43 : vector<1x128xf32> to vector<32x128xf32>
    %45 = arith.subf %41, %44 : vector<32x128xf32>
    %46 = math.exp %45 : vector<32x128xf32>
    %cst_26 = arith.constant dense<0.000000e+00> : vector<16x128xf32>
    %47 = tpu.matmul %7, %46, %cst_26 {dimension_numbers = #tpu.dot_dimension_numbers<[1], [0], [0], [1], [0, 0, 1, 1], [], []>} : vector<16x32xf32>, vector<32x128xf32>, vector<16x128xf32> -> vector<16x128xf32>
    %cst_27 = arith.constant dense<0.000000e+00> : vector<32x128xf32>
    %48 = tpu.matmul %17, %47, %cst_27 {dimension_numbers = #tpu.dot_dimension_numbers<[1], [0], [0], [1], [0, 0, 1, 1], [], []>} : vector<32x16xf32>, vector<16x128xf32>, vector<32x128xf32> -> vector<32x128xf32>
    %49 = tpu.reciprocal %48 {approx = true} : vector<32x128xf32> -> vector<32x128xf32>
    %50 = arith.mulf %46, %49 : vector<32x128xf32>
    %51 = vector.extract_strided_slice %50 {offsets = [0, 0], sizes = [32, 32], strides = [1, 1]} : vector<32x128xf32> to vector<32x32xf32>
    %52 = vector.extract_strided_slice %50 {offsets = [0, 32], sizes = [32, 32], strides = [1, 1]} : vector<32x128xf32> to vector<32x32xf32>
    %53 = arith.addf %51, %52 : vector<32x32xf32>
    %54 = vector.extract_strided_slice %50 {offsets = [0, 64], sizes = [32, 32], strides = [1, 1]} : vector<32x128xf32> to vector<32x32xf32>
    %55 = arith.addf %53, %54 : vector<32x32xf32>
    %56 = vector.extract_strided_slice %50 {offsets = [0, 96], sizes = [32, 32], strides = [1, 1]} : vector<32x128xf32> to vector<32x32xf32>
    %57 = arith.addf %55, %56 : vector<32x32xf32>
    %58 = arith.mulf %57, %38 : vector<32x32xf32>
    %cst_28 = arith.constant dense<0.000000e+00> : vector<16x32xf32>
    %59 = tpu.matmul %12, %58, %cst_28 {dimension_numbers = #tpu.dot_dimension_numbers<[1], [0], [0], [1], [0, 0, 1, 1], [], []>} : vector<16x32xf32>, vector<32x32xf32>, vector<16x32xf32> -> vector<16x32xf32>
    %cst_29 = arith.constant 2.500000e-01 : f32
    %60 = vector.broadcast %cst_29 : f32 to vector<16x32xf32>
    %61 = arith.mulf %59, %60 : vector<16x32xf32>
    %c0_30 = arith.constant 0 : index
    %c0_31 = arith.constant 0 : index
    %62 = vector.load %arg9[%c0_30, %c0_31] : memref<32x96xf32, #tpu.memory_space<vmem>>, vector<32x96xf32>
    %cst_32 = arith.constant dense<0.000000e+00> : vector<16x96xf32>
    %63 = tpu.matmul %0, %62, %cst_32 {dimension_numbers = #tpu.dot_dimension_numbers<[1], [0], [0], [1], [0, 0, 1, 1], [], []>} : vector<16x32xf32>, vector<32x96xf32>, vector<16x96xf32> -> vector<16x96xf32>
    %c0_33 = arith.constant 0 : index
    %c0_34 = arith.constant 0 : index
    %64 = vector.load %arg11[%c0_33, %c0_34] : memref<1x96xf32, #tpu.memory_space<vmem>>, vector<1x96xf32>
    %65 = vector.broadcast %64 : vector<1x96xf32> to vector<16x96xf32>
    %66 = arith.addf %63, %65 : vector<16x96xf32>
    %c0_35 = arith.constant 0 : index
    %c0_36 = arith.constant 0 : index
    %67 = vector.load %arg10[%c0_35, %c0_36] : memref<32x96xf32, #tpu.memory_space<vmem>>, vector<32x96xf32>
    %cst_37 = arith.constant dense<0.000000e+00> : vector<16x96xf32>
    %68 = tpu.matmul %61, %67, %cst_37 {dimension_numbers = #tpu.dot_dimension_numbers<[1], [0], [0], [1], [0, 0, 1, 1], [], []>} : vector<16x32xf32>, vector<32x96xf32>, vector<16x96xf32> -> vector<16x96xf32>
    %c0_38 = arith.constant 0 : index
    %c0_39 = arith.constant 0 : index
    %69 = vector.load %arg12[%c0_38, %c0_39] : memref<1x96xf32, #tpu.memory_space<vmem>>, vector<1x96xf32>
    %70 = vector.broadcast %69 : vector<1x96xf32> to vector<16x96xf32>
    %71 = arith.addf %68, %70 : vector<16x96xf32>
    %72 = vector.extract_strided_slice %66 {offsets = [0, 0], sizes = [16, 32], strides = [1, 1]} : vector<16x96xf32> to vector<16x32xf32>
    %73 = vector.extract_strided_slice %71 {offsets = [0, 0], sizes = [16, 32], strides = [1, 1]} : vector<16x96xf32> to vector<16x32xf32>
    %74 = arith.addf %72, %73 : vector<16x32xf32>
    %75 = arith.negf %74 : vector<16x32xf32>
    %76 = math.exp %75 : vector<16x32xf32>
    %cst_40 = arith.constant 1.000000e+00 : f32
    %77 = vector.broadcast %cst_40 : f32 to vector<16x32xf32>
    %78 = arith.addf %77, %76 : vector<16x32xf32>
    %79 = arith.divf %77, %78 : vector<16x32xf32>
    %80 = vector.extract_strided_slice %66 {offsets = [0, 32], sizes = [16, 32], strides = [1, 1]} : vector<16x96xf32> to vector<16x32xf32>
    %81 = vector.extract_strided_slice %71 {offsets = [0, 32], sizes = [16, 32], strides = [1, 1]} : vector<16x96xf32> to vector<16x32xf32>
    %82 = arith.addf %80, %81 : vector<16x32xf32>
    %83 = arith.negf %82 : vector<16x32xf32>
    %84 = math.exp %83 : vector<16x32xf32>
    %cst_41 = arith.constant 1.000000e+00 : f32
    %85 = vector.broadcast %cst_41 : f32 to vector<16x32xf32>
    %86 = arith.addf %85, %84 : vector<16x32xf32>
    %87 = arith.divf %85, %86 : vector<16x32xf32>
    %88 = vector.extract_strided_slice %66 {offsets = [0, 64], sizes = [16, 32], strides = [1, 1]} : vector<16x96xf32> to vector<16x32xf32>
    %89 = vector.extract_strided_slice %71 {offsets = [0, 64], sizes = [16, 32], strides = [1, 1]} : vector<16x96xf32> to vector<16x32xf32>
    %90 = arith.mulf %79, %89 : vector<16x32xf32>
    %91 = arith.addf %88, %90 : vector<16x32xf32>
    %92 = math.tanh %91 : vector<16x32xf32>
    %cst_42 = arith.constant 1.000000e+00 : f32
    %93 = vector.broadcast %cst_42 : f32 to vector<16x32xf32>
    %94 = arith.subf %93, %87 : vector<16x32xf32>
    %95 = arith.mulf %94, %92 : vector<16x32xf32>
    %96 = arith.mulf %87, %61 : vector<16x32xf32>
    %97 = arith.addf %95, %96 : vector<16x32xf32>
    %c0_43 = arith.constant 0 : index
    %c0_44 = arith.constant 0 : index
    %98 = vector.load %arg13[%c0_43, %c0_44] : memref<16x32xf32, #tpu.memory_space<vmem>>, vector<16x32xf32>
    tpu.vector_store %arg13[%c0_43, %c0_44], %97 {strides = array<i32>} : memref<16x32xf32, #tpu.memory_space<vmem>>, vector<16x32xf32>,
    return
  }
}

</mosaic_0001>

<llo_original>
// kernel: gnn_layer_forward.1
$region0: #{gnn_layer_forward.1}
  #allocation0 [shape = 'u32[]', space=smem, size = 0x4, offset = 0x4, fixed_abs, tag = 'smem constant byte address 0x4 - core index']
  #allocation1 [shape = 'u32[144,128]{1,0:T(1,128)}', space=vmem, size = 0x12000, scoped, tag = 'internal scratch']
  %s0 = inlined_call_operand.hbm [shape: f32[16,32], index: 0, kind: input, shape index: {}]
  %s1 = inlined_call_operand.vmem [shape: f32[32,16], index: 1, kind: input, shape index: {}]
  %s2 = inlined_call_operand.vmem [shape: s32[1,32], index: 2, kind: input, shape index: {}]
  %s3 = inlined_call_operand.vmem [shape: s32[32,1], index: 3, kind: input, shape index: {}]
  %s4 = inlined_call_operand.vmem [shape: s32[1,32], index: 4, kind: input, shape index: {}]
  %s5 = inlined_call_operand.vmem [shape: s32[32,1], index: 5, kind: input, shape index: {}]
  %s6 = inlined_call_operand.hbm [shape: f32[16,32], index: 6, kind: input, shape index: {}]
  %s7 = inlined_call_operand.vmem [shape: f32[32,64], index: 7, kind: input, shape index: {}]
  %s8 = inlined_call_operand.vmem [shape: f32[32,128], index: 8, kind: input, shape index: {}]
  %s9 = inlined_call_operand.vmem [shape: f32[32,96], index: 9, kind: input, shape index: {}]
  %s10 = inlined_call_operand.vmem [shape: f32[32,96], index: 10, kind: input, shape index: {}]
  %s11 = inlined_call_operand.vmem [shape: f32[1,96], index: 11, kind: input, shape index: {}]
  %s12 = inlined_call_operand.vmem [shape: f32[1,96], index: 12, kind: input, shape index: {}]
  %s13 = inlined_call_operand.hbm [shape: f32[16,32], index: 13, kind: output, shape index: {0}]
  %s14 = inlined_call_operand.hbm [shape: f32[32,32], index: 14, kind: output, shape index: {1}]
  %15 = xla_tuple %s13, %s14
  %s16 = sld [smem:[#allocation0]]
  $region78: #{gnn_layer_forward.1} parent=0
    _
  %s18 = ssub.s32 1, %s16
  %s19 = scalar_select 0, %s18, %s16
  $region1: #{gnn_layer_forward.1} parent=0
    #allocation2 [shape = 'u8[8192]{0}', space=vmem, size = 0x2000, scoped, tag = 'input window, operand 0, single buffered']
    #allocation3 [shape = 's32[1]{0}', space=sflag, size = 0x4, scoped, tag = 'scoped memory for gnn_layer_forward.1']
    #allocation4 [shape = 's32[1]{0}', space=sflag, size = 0x4, scoped, tag = 'scoped memory for gnn_layer_forward.1']
    #allocation5 [shape = 'u8[8192]{0}', space=vmem, size = 0x2000, scoped, tag = 'input window, operand 6, single buffered']
    #allocation6 [shape = 's32[1]{0}', space=sflag, size = 0x4, scoped, tag = 'scoped memory for gnn_layer_forward.1']
    #allocation7 [shape = 'u8[8192]{0}', space=vmem, size = 0x2000, scoped, tag = 'output window, operand 0, single buffered']
    #allocation8 [shape = 'u8[16384]{0}', space=vmem, size = 0x4000, scoped, tag = 'output window, operand 1, single buffered']
    #allocation9 [shape = 's32[1]{0}', space=sflag, size = 0x4, scoped, tag = 'scoped memory for gnn_layer_forward.1']
    %20 = vsyncpa [#allocation3], 0
    %21 = vsyncpa [#allocation6], 0
    %22 = vsyncpa [#allocation4], 0
    %23 = vsyncpa [#allocation9], 0
    // Predicated region
    $region2: #{gnn_layer_forward.1} parent=1 // pred_check
      _
    $region3: #{gnn_layer_forward.1} parent=1 // pred_check_branch
      %25 = sbr.rel (0) target = $region5
    $region4: #{gnn_layer_forward.1} parent=1 // pred_region
      %s27 = ssub.s32 256, 256
      %28 = vsyncadd [#allocation3], %s27
      %s29 = sshll.u32 [#allocation2], 4
      %s30 = int_to_ptr.vmem [resolvable:$true] %s29
      %35 = dma.hbm_to_vmem [thread:$0]  %s0, 256, %s30, [#allocation3], 128, 128, 8
    $region5: #{gnn_layer_forward.1} parent=1 // pred_fallthru
      _
    // Predicated region
    $region6: #{gnn_layer_forward.1} parent=1 // pred_check
      _
    $region7: #{gnn_layer_forward.1} parent=1 // pred_check_branch
      %37 = sbr.rel (0) target = $region9
    $region8: #{gnn_layer_forward.1} parent=1 // pred_region
      _
    $region9: #{gnn_layer_forward.1} parent=1 // pred_fallthru
      _
    // Predicated region
    $region10: #{gnn_layer_forward.1} parent=1 // pred_check
      _
    $region11: #{gnn_layer_forward.1} parent=1 // pred_check_branch
      %39 = sbr.rel (0) target = $region13
    $region12: #{gnn_layer_forward.1} parent=1 // pred_region
      _
    $region13: #{gnn_layer_forward.1} parent=1 // pred_fallthru
      _
    // Predicated region
    $region14: #{gnn_layer_forward.1} parent=1 // pred_check
      _
    $region15: #{gnn_layer_forward.1} parent=1 // pred_check_branch
      %41 = sbr.rel (0) target = $region17
    $region16: #{gnn_layer_forward.1} parent=1 // pred_region
      _
    $region17: #{gnn_layer_forward.1} parent=1 // pred_fallthru
      _
    // Predicated region
    $region18: #{gnn_layer_forward.1} parent=1 // pred_check
      _
    $region19: #{gnn_layer_forward.1} parent=1 // pred_check_branch
      %43 = sbr.rel (0) target = $region21
    $region20: #{gnn_layer_forward.1} parent=1 // pred_region
      _
    $region21: #{gnn_layer_forward.1} parent=1 // pred_fallthru
      _
    // Predicated region
    $region22: #{gnn_layer_forward.1} parent=1 // pred_check
      _
    $region23: #{gnn_layer_forward.1} parent=1 // pred_check_branch
      %45 = sbr.rel (0) target = $region25
    $region24: #{gnn_layer_forward.1} parent=1 // pred_region
      _
    $region25: #{gnn_layer_forward.1} parent=1 // pred_fallthru
      _
    // Predicated region
    $region26: #{gnn_layer_forward.1} parent=1 // pred_check
      _
    $region27: #{gnn_layer_forward.1} parent=1 // pred_check_branch
      %47 = sbr.rel (0) target = $region29
    $region28: #{gnn_layer_forward.1} parent=1 // pred_region
      %s49 = ssub.s32 256, 256
      %50 = vsyncadd [#allocation6], %s49
      %s51 = sshll.u32 [#allocation5], 4
      %s52 = int_to_ptr.vmem [resolvable:$true] %s51
      %57 = dma.hbm_to_vmem [thread:$0]  %s6, 256, %s52, [#allocation6], 128, 128, 8
    $region29: #{gnn_layer_forward.1} parent=1 // pred_fallthru
      _
    // Predicated region
    $region30: #{gnn_layer_forward.1} parent=1 // pred_check
      _
    $region31: #{gnn_layer_forward.1} parent=1 // pred_check_branch
      %59 = sbr.rel (0) target = $region33
    $region32: #{gnn_layer_forward.1} parent=1 // pred_region
      _
    $region33: #{gnn_layer_forward.1} parent=1 // pred_fallthru
      _
    // Predicated region
    $region34: #{gnn_layer_forward.1} parent=1 // pred_check
      _
    $region35: #{gnn_layer_forward.1} parent=1 // pred_check_branch
      %61 = sbr.rel (0) target = $region37
    $region36: #{gnn_layer_forward.1} parent=1 // pred_region
      _
    $region37: #{gnn_layer_forward.1} parent=1 // pred_fallthru
      _
    // Predicated region
    $region38: #{gnn_layer_forward.1} parent=1 // pred_check
      _
    $region39: #{gnn_layer_forward.1} parent=1 // pred_check_branch
      %63 = sbr.rel (0) target = $region41
    $region40: #{gnn_layer_forward.1} parent=1 // pred_region
      _
    $region41: #{gnn_layer_forward.1} parent=1 // pred_fallthru
      _
    // Predicated region
    $region42: #{gnn_layer_forward.1} parent=1 // pred_check
      _
    $region43: #{gnn_layer_forward.1} parent=1 // pred_check_branch
      %65 = sbr.rel (0) target = $region45
    $region44: #{gnn_layer_forward.1} parent=1 // pred_region
      _
    $region45: #{gnn_layer_forward.1} parent=1 // pred_fallthru
      _
    // Predicated region
    $region46: #{gnn_layer_forward.1} parent=1 // pred_check
      _
    $region47: #{gnn_layer_forward.1} parent=1 // pred_check_branch
      %67 = sbr.rel (0) target = $region49
    $region48: #{gnn_layer_forward.1} parent=1 // pred_region
      _
    $region49: #{gnn_layer_forward.1} parent=1 // pred_fallthru
      _
    // Predicated region
    $region50: #{gnn_layer_forward.1} parent=1 // pred_check
      _
    $region51: #{gnn_layer_forward.1} parent=1 // pred_check_branch
      %69 = sbr.rel (0) target = $region53
    $region52: #{gnn_layer_forward.1} parent=1 // pred_region
      _
    $region53: #{gnn_layer_forward.1} parent=1 // pred_fallthru
      _
    // Predicated region
    $region54: #{gnn_layer_forward.1} parent=1 // pred_check
      _
    $region55: #{gnn_layer_forward.1} parent=1 // pred_check_branch
      %71 = sbr.rel (0) target = $region57
    $region56: #{gnn_layer_forward.1} parent=1 // pred_region
      %72 = dma.done [#allocation3], 256
    $region57: #{gnn_layer_forward.1} parent=1 // pred_fallthru
      _
    // Predicated region
    $region58: #{gnn_layer_forward.1} parent=1 // pred_check
      _
    $region59: #{gnn_layer_forward.1} parent=1 // pred_check_branch
      %74 = sbr.rel (0) target = $region61
    $region60: #{gnn_layer_forward.1} parent=1 // pred_region
      %75 = dma.done [#allocation6], 256
    $region61: #{gnn_layer_forward.1} parent=1 // pred_fallthru
      _
    %v76 = vld [vmem:[#allocation2] sm:$0xff]
    %v77 = vld [vmem:[#allocation2 + $0x8] sm:$0xff]
    %v78 = vlaneseq
    %v79 = vshrl.u32 %v78, 7
    %v80 = vadd.s32 %v79, 8
    %v81 = vlaneseq
    %v82 = vand.u32 %v81, 127
    %v83 = vld [vmem:[%s2] sm:$0x1]
    %v84 = vlaneseq
    %v85 = vshrl.u32 %v84, 7
    %v86 = vsub.s32 0, %v85
    %v87 = vrot.slane %v83, %v86
    %vm88 = vcmp.eq.s32.totalorder %v79, %v87
    %vm89 = vcmp.eq.s32.totalorder %v80, %v87
    %v90 = vsel %vm88, 1, 0
    %v91 = vsel %vm89, 1, 0
    %v92 = vcvt.s32.f32 %v90
    %v93 = vcvt.s32.f32 %v91
    %v94 = vld [vmem:[%s4] sm:$0x1]
    %v95 = vlaneseq
    %v96 = vshrl.u32 %v95, 7
    %v97 = vsub.s32 0, %v96
    %v98 = vrot.slane %v94, %v97
    %vm99 = vcmp.eq.s32.totalorder %v79, %v98
    %vm100 = vcmp.eq.s32.totalorder %v80, %v98
    %v101 = vsel %vm99, 1, 0
    %v102 = vsel %vm100, 1, 0
    %v103 = vcvt.s32.f32 %v101
    %v104 = vcvt.s32.f32 %v102
    %v105 = vld [vmem:[%s3] sm:$0xff]
    %v106 = vld [vmem:[%s3 + $0x8] sm:$0xff]
    %v107 = vld [vmem:[%s3 + $0x10] sm:$0xff]
    %v108 = vld [vmem:[%s3 + $0x18] sm:$0xff]
    %109 = vset.pattern.permute.xlu0 0
    %110 = vperm.xlu0 %109, %v105
    %v111 = vpop.permute.xlu0 %110
    %112 = vset.pattern.permute.xlu0 0
    %113 = vperm.xlu0 %112, %v106
    %v114 = vpop.permute.xlu0 %113
    %115 = vset.pattern.permute.xlu0 0
    %116 = vperm.xlu0 %115, %v107
    %v117 = vpop.permute.xlu0 %116
    %118 = vset.pattern.permute.xlu0 0
    %119 = vperm.xlu0 %118, %v108
    %v120 = vpop.permute.xlu0 %119
    %vm121 = vcmp.eq.s32.totalorder %v82, %v111
    %vm122 = vcmp.eq.s32.totalorder %v82, %v114
    %vm123 = vcmp.eq.s32.totalorder %v82, %v117
    %vm124 = vcmp.eq.s32.totalorder %v82, %v120
    %v125 = vsel %vm121, 1, 0
    %v126 = vsel %vm122, 1, 0
    %v127 = vsel %vm123, 1, 0
    %v128 = vsel %vm124, 1, 0
    %v129 = vcvt.s32.f32 %v125
    %v130 = vcvt.s32.f32 %v126
    %v131 = vcvt.s32.f32 %v127
    %v132 = vcvt.s32.f32 %v128
    %v133 = vld [vmem:[%s5] sm:$0xff]
    %v134 = vld [vmem:[%s5 + $0x8] sm:$0xff]
    %v135 = vld [vmem:[%s5 + $0x10] sm:$0xff]
    %v136 = vld [vmem:[%s5 + $0x18] sm:$0xff]
    %137 = vset.pattern.permute.xlu0 0
    %138 = vperm.xlu0 %137, %v133
    %v139 = vpop.permute.xlu0 %138
    %140 = vset.pattern.permute.xlu0 0
    %141 = vperm.xlu0 %140, %v134
    %v142 = vpop.permute.xlu0 %141
    %143 = vset.pattern.permute.xlu0 0
    %144 = vperm.xlu0 %143, %v135
    %v145 = vpop.permute.xlu0 %144
    %146 = vset.pattern.permute.xlu0 0
    %147 = vperm.xlu0 %146, %v136
    %v148 = vpop.permute.xlu0 %147
    %vm149 = vcmp.eq.s32.totalorder %v82, %v139
    %vm150 = vcmp.eq.s32.totalorder %v82, %v142
    %vm151 = vcmp.eq.s32.totalorder %v82, %v145
    %vm152 = vcmp.eq.s32.totalorder %v82, %v148
    %v153 = vsel %vm149, 1, 0
    %v154 = vsel %vm150, 1, 0
    %v155 = vsel %vm151, 1, 0
    %v156 = vsel %vm152, 1, 0
    %v157 = vcvt.s32.f32 %v153
    %v158 = vcvt.s32.f32 %v154
    %v159 = vcvt.s32.f32 %v155
    %v160 = vcvt.s32.f32 %v156
    %v161 = vld [vmem:[%s7] sm:$0xff]
    %v162 = vld [vmem:[%s7 + $0x8] sm:$0xff]
    %v163 = vld [vmem:[%s7 + $0x10] sm:$0xff]
    %v164 = vld [vmem:[%s7 + $0x18] sm:$0xff]
    %vm165 = vcmask 261120
    %v167 = vsel %vm165, %v76, 0
    %v170 = vsel %vm165, %v77, 0
    %172 = vmatprep.subr.mxu0 0.0
    %173 = vmatpush1.msra.mxu0 0.0
    %174 = vmatprep.subr.mxu0 0.0
    %175 = vmatpush1.msra.mxu0 0.0
    %176 = vmatprep.subr.mxu0 0.0
    %177 = vmatpush1.msra.mxu0 0.0
    %178 = vmatprep.subr.mxu0 0.0
    %179 = vmatpush1.msra.mxu0 0.0
    %180 = vmatprep.subr.mxu0 0.0
    %181 = vmatpush1.msra.mxu0 0.0
    %182 = vmatprep.subr.mxu0 0.0
    %183 = vmatpush1.msra.mxu0 0.0
    %184 = vmatprep.subr.mxu0 0.0
    %185 = vmatpush1.msra.mxu0 0.0
    %186 = vmatprep.subr.mxu0 0.0
    %187 = vmatpush1.msra.mxu0 0.0
    %188 = vmatprep.subr.mxu0 0.0
    %189 = vmatpush1.msra.mxu0 0.0
    %190 = vmatprep.subr.mxu0 0.0
    %191 = vmatpush1.msra.mxu0 0.0
    %192 = vmatprep.subr.mxu0 0.0
    %193 = vmatpush1.msra.mxu0 0.0
    %194 = vmatprep.subr.mxu0 0.0
    %195 = vmatpush1.msra.mxu0 0.0
    %196 = vmatprep.subr.mxu0 0.0
    %197 = vmatpush1.msra.mxu0 %v164
    %198 = vmatprep.subr.mxu0 0.0
    %199 = vmatpush1.msra.mxu0 %v163
    %200 = vmatprep.subr.mxu0 0.0
    %201 = vmatpush1.msra.mxu0 %v162
    %202 = vmatprep.subr.mxu0 0.0
    %203 = vmatpush1.msra.mxu0 %v161
    %204 = vmatprep.subr.mxu0 0.0
    %205 = vmatpush2.msra.mxu0 0.0
    %206 = vmatprep.subr.mxu0 0.0
    %207 = vmatpush2.msra.mxu0 0.0
    %208 = vmatprep.subr.mxu0 0.0
    %209 = vmatpush2.msra.mxu0 0.0
    %210 = vmatprep.subr.mxu0 0.0
    %211 = vmatpush2.msra.mxu0 0.0
    %212 = vmatprep.subr.mxu0 0.0
    %213 = vmatpush2.msra.mxu0 0.0
    %214 = vmatprep.subr.mxu0 0.0
    %215 = vmatpush2.msra.mxu0 0.0
    %216 = vmatprep.subr.mxu0 0.0
    %217 = vmatpush2.msra.mxu0 0.0
    %218 = vmatprep.subr.mxu0 0.0
    %219 = vmatpush2.msra.mxu0 0.0
    %220 = vmatprep.subr.mxu0 0.0
    %221 = vmatpush2.msra.mxu0 0.0
    %222 = vmatprep.subr.mxu0 0.0
    %223 = vmatpush2.msra.mxu0 0.0
    %224 = vmatprep.subr.mxu0 0.0
    %225 = vmatpush2.msra.mxu0 0.0
    %226 = vmatprep.subr.mxu0 0.0
    %227 = vmatpush2.msra.mxu0 0.0
    %228 = vmatprep.subr.mxu0 0.0
    %229 = vmatpush2.msra.mxu0 0.0
    %230 = vmatprep.subr.mxu0 0.0
    %231 = vmatpush2.msra.mxu0 0.0
    %232 = vmatprep.subr.mxu0 0.0
    %233 = vmatpush2.msra.mxu0 0.0
    %234 = vmatprep.subr.mxu0 0.0
    %235 = vmatpush2.msra.mxu0 0.0
    %236 = vmatprep.mubr.f32.mxu0 0.0
    %237 = vmatmul.mubr.f32.gmra.mxu0 %v167
    %v238 = vpop.f32.mrf.mxu0
    %v239 = vadd.f32 0.0, %v238
    %v240 = vpop.f32.mrf.mxu0
    %241 = vmatprep.mubr.f32.mxu0 0.0
    %242 = vmatmul.mubr.f32.gmra.mxu0 %v170
    %v243 = vpop.f32.mrf.mxu0
    %v244 = vadd.f32 0.0, %v243
    %v245 = vpop.f32.mrf.mxu0
    %246 = vdwg.mxu0
    %v247 = vld [vmem:[%s1] sm:$0xff]
    %v248 = vld [vmem:[%s1 + $0x8] sm:$0xff]
    %v249 = vld [vmem:[%s1 + $0x10] sm:$0xff]
    %v250 = vld [vmem:[%s1 + $0x18] sm:$0xff]
    %v251 = vld [vmem:[#allocation5] sm:$0xff]
    %v252 = vld [vmem:[#allocation5 + $0x8] sm:$0xff]
    %vm253 = vcmask 130048
    %v255 = vsel %vm253, %v129, 0
    %v258 = vsel %vm253, %v130, 0
    %v261 = vsel %vm253, %v131, 0
    %v264 = vsel %vm253, %v132, 0
    %266 = vmatprep.subr.mxu0 0.0
    %267 = vmatpush1.msra.mxu0 0.0
    %268 = vmatprep.subr.mxu0 0.0
    %269 = vmatpush1.msra.mxu0 0.0
    %270 = vmatprep.subr.mxu0 0.0
    %271 = vmatpush1.msra.mxu0 0.0
    %272 = vmatprep.subr.mxu0 0.0
    %273 = vmatpush1.msra.mxu0 0.0
    %274 = vmatprep.subr.mxu0 0.0
    %275 = vmatpush1.msra.mxu0 0.0
    %276 = vmatprep.subr.mxu0 0.0
    %277 = vmatpush1.msra.mxu0 0.0
    %278 = vmatprep.subr.mxu0 0.0
    %279 = vmatpush1.msra.mxu0 0.0
    %280 = vmatprep.subr.mxu0 0.0
    %281 = vmatpush1.msra.mxu0 0.0
    %282 = vmatprep.subr.mxu0 0.0
    %283 = vmatpush1.msra.mxu0 0.0
    %284 = vmatprep.subr.mxu0 0.0
    %285 = vmatpush1.msra.mxu0 0.0
    %286 = vmatprep.subr.mxu0 0.0
    %287 = vmatpush1.msra.mxu0 0.0
    %288 = vmatprep.subr.mxu0 0.0
    %289 = vmatpush1.msra.mxu0 0.0
    %290 = vmatprep.subr.mxu0 0.0
    %291 = vmatpush1.msra.mxu0 0.0
    %292 = vmatprep.subr.mxu0 0.0
    %293 = vmatpush1.msra.mxu0 0.0
    %294 = vmatprep.subr.mxu0 0.0
    %295 = vmatpush1.msra.mxu0 %v244
    %296 = vmatprep.subr.mxu0 0.0
    %297 = vmatpush1.msra.mxu0 %v239
    %298 = vmatprep.subr.mxu0 0.0
    %299 = vmatpush2.msra.mxu0 0.0
    %300 = vmatprep.subr.mxu0 0.0
    %301 = vmatpush2.msra.mxu0 0.0
    %302 = vmatprep.subr.mxu0 0.0
    %303 = vmatpush2.msra.mxu0 0.0
    %304 = vmatprep.subr.mxu0 0.0
    %305 = vmatpush2.msra.mxu0 0.0
    %306 = vmatprep.subr.mxu0 0.0
    %307 = vmatpush2.msra.mxu0 0.0
    %308 = vmatprep.subr.mxu0 0.0
    %309 = vmatpush2.msra.mxu0 0.0
    %310 = vmatprep.subr.mxu0 0.0
    %311 = vmatpush2.msra.mxu0 0.0
    %312 = vmatprep.subr.mxu0 0.0
    %313 = vmatpush2.msra.mxu0 0.0
    %314 = vmatprep.subr.mxu0 0.0
    %315 = vmatpush2.msra.mxu0 0.0
    %316 = vmatprep.subr.mxu0 0.0
    %317 = vmatpush2.msra.mxu0 0.0
    %318 = vmatprep.subr.mxu0 0.0
    %319 = vmatpush2.msra.mxu0 0.0
    %320 = vmatprep.subr.mxu0 0.0
    %321 = vmatpush2.msra.mxu0 0.0
    %322 = vmatprep.subr.mxu0 0.0
    %323 = vmatpush2.msra.mxu0 0.0
    %324 = vmatprep.subr.mxu0 0.0
    %325 = vmatpush2.msra.mxu0 0.0
    %326 = vmatprep.subr.mxu0 0.0
    %327 = vmatpush2.msra.mxu0 0.0
    %328 = vmatprep.subr.mxu0 0.0
    %329 = vmatpush2.msra.mxu0 0.0
    %330 = vmatprep.mubr.f32.mxu0 0.0
    %331 = vmatmul.mubr.f32.gmra.mxu0 %v255
    %v332 = vpop.f32.mrf.mxu0
    %v333 = vadd.f32 0.0, %v332
    %v334 = vpop.f32.mrf.mxu0
    %335 = vmatprep.mubr.f32.mxu0 0.0
    %336 = vmatmul.mubr.f32.gmra.mxu0 %v258
    %v337 = vpop.f32.mrf.mxu0
    %v338 = vadd.f32 0.0, %v337
    %v339 = vpop.f32.mrf.mxu0
    %340 = vmatprep.mubr.f32.mxu0 0.0
    %341 = vmatmul.mubr.f32.gmra.mxu0 %v261
    %v342 = vpop.f32.mrf.mxu0
    %v343 = vadd.f32 0.0, %v342
    %v344 = vpop.f32.mrf.mxu0
    %345 = vmatprep.mubr.f32.mxu0 0.0
    %346 = vmatmul.mubr.f32.gmra.mxu0 %v264
    %v347 = vpop.f32.mrf.mxu0
    %v348 = vadd.f32 0.0, %v347
    %v349 = vpop.f32.mrf.mxu0
    %350 = vdwg.mxu0
    %v352 = vsel %vm253, %v247, 0
    %v355 = vsel %vm253, %v248, 0
    %v358 = vsel %vm253, %v249, 0
    %v361 = vsel %vm253, %v250, 0
    %363 = vmatprep.subr.mxu0 0.0
    %364 = vmatpush1.msra.mxu0 0.0
    %365 = vmatprep.subr.mxu0 0.0
    %366 = vmatpush1.msra.mxu0 0.0
    %367 = vmatprep.subr.mxu0 0.0
    %368 = vmatpush1.msra.mxu0 0.0
    %369 = vmatprep.subr.mxu0 0.0
    %370 = vmatpush1.msra.mxu0 0.0
    %371 = vmatprep.subr.mxu0 0.0
    %372 = vmatpush1.msra.mxu0 0.0
    %373 = vmatprep.subr.mxu0 0.0
    %374 = vmatpush1.msra.mxu0 0.0
    %375 = vmatprep.subr.mxu0 0.0
    %376 = vmatpush1.msra.mxu0 0.0
    %377 = vmatprep.subr.mxu0 0.0
    %378 = vmatpush1.msra.mxu0 0.0
    %379 = vmatprep.subr.mxu0 0.0
    %380 = vmatpush1.msra.mxu0 0.0
    %381 = vmatprep.subr.mxu0 0.0
    %382 = vmatpush1.msra.mxu0 0.0
    %383 = vmatprep.subr.mxu0 0.0
    %384 = vmatpush1.msra.mxu0 0.0
    %385 = vmatprep.subr.mxu0 0.0
    %386 = vmatpush1.msra.mxu0 0.0
    %387 = vmatprep.subr.mxu0 0.0
    %388 = vmatpush1.msra.mxu0 0.0
    %389 = vmatprep.subr.mxu0 0.0
    %390 = vmatpush1.msra.mxu0 0.0
    %391 = vmatprep.subr.mxu0 0.0
    %392 = vmatpush1.msra.mxu0 %v252
    %393 = vmatprep.subr.mxu0 0.0
    %394 = vmatpush1.msra.mxu0 %v251
    %395 = vmatprep.subr.mxu0 0.0
    %396 = vmatpush2.msra.mxu0 0.0
    %397 = vmatprep.subr.mxu0 0.0
    %398 = vmatpush2.msra.mxu0 0.0
    %399 = vmatprep.subr.mxu0 0.0
    %400 = vmatpush2.msra.mxu0 0.0
    %401 = vmatprep.subr.mxu0 0.0
    %402 = vmatpush2.msra.mxu0 0.0
    %403 = vmatprep.subr.mxu0 0.0
    %404 = vmatpush2.msra.mxu0 0.0
    %405 = vmatprep.subr.mxu0 0.0
    %406 = vmatpush2.msra.mxu0 0.0
    %407 = vmatprep.subr.mxu0 0.0
    %408 = vmatpush2.msra.mxu0 0.0
    %409 = vmatprep.subr.mxu0 0.0
    %410 = vmatpush2.msra.mxu0 0.0
    %411 = vmatprep.subr.mxu0 0.0
    %412 = vmatpush2.msra.mxu0 0.0
    %413 = vmatprep.subr.mxu0 0.0
    %414 = vmatpush2.msra.mxu0 0.0
    %415 = vmatprep.subr.mxu0 0.0
    %416 = vmatpush2.msra.mxu0 0.0
    %417 = vmatprep.subr.mxu0 0.0
    %418 = vmatpush2.msra.mxu0 0.0
    %419 = vmatprep.subr.mxu0 0.0
    %420 = vmatpush2.msra.mxu0 0.0
    %421 = vmatprep.subr.mxu0 0.0
    %422 = vmatpush2.msra.mxu0 0.0
    %423 = vmatprep.subr.mxu0 0.0
    %424 = vmatpush2.msra.mxu0 0.0
    %425 = vmatprep.subr.mxu0 0.0
    %426 = vmatpush2.msra.mxu0 0.0
    %427 = vmatprep.mubr.f32.mxu0 0.0
    %428 = vmatmul.mubr.f32.gmra.mxu0 %v352
    %v429 = vpop.f32.mrf.mxu0
    %v430 = vadd.f32 %v333, %v429
    %v431 = vpop.f32.mrf.mxu0
    %432 = vmatprep.mubr.f32.mxu0 0.0
    %433 = vmatmul.mubr.f32.gmra.mxu0 %v355
    %v434 = vpop.f32.mrf.mxu0
    %v435 = vadd.f32 %v338, %v434
    %v436 = vpop.f32.mrf.mxu0
    %437 = vmatprep.mubr.f32.mxu0 0.0
    %438 = vmatmul.mubr.f32.gmra.mxu0 %v358
    %v439 = vpop.f32.mrf.mxu0
    %v440 = vadd.f32 %v343, %v439
    %v441 = vpop.f32.mrf.mxu0
    %442 = vmatprep.mubr.f32.mxu0 0.0
    %443 = vmatmul.mubr.f32.gmra.mxu0 %v361
    %v444 = vpop.f32.mrf.mxu0
    %v445 = vadd.f32 %v348, %v444
    %v446 = vpop.f32.mrf.mxu0
    %447 = vdwg.mxu0
    %450 = vrot.lane.b32.xlu0 %v239, 96
    %v451 = vpop.permute.xlu0 %450
    %452 = vrot.lane.b32.xlu0 %v244, 96
    %v453 = vpop.permute.xlu0 %452
    %v457 = vsel %vm253, %v157, 0
    %v460 = vsel %vm253, %v158, 0
    %v463 = vsel %vm253, %v159, 0
    %v466 = vsel %vm253, %v160, 0
    %468 = vmatprep.subr.mxu0 0.0
    %469 = vmatpush1.msra.mxu0 0.0
    %470 = vmatprep.subr.mxu0 0.0
    %471 = vmatpush1.msra.mxu0 0.0
    %472 = vmatprep.subr.mxu0 0.0
    %473 = vmatpush1.msra.mxu0 0.0
    %474 = vmatprep.subr.mxu0 0.0
    %475 = vmatpush1.msra.mxu0 0.0
    %476 = vmatprep.subr.mxu0 0.0
    %477 = vmatpush1.msra.mxu0 0.0
    %478 = vmatprep.subr.mxu0 0.0
    %479 = vmatpush1.msra.mxu0 0.0
    %480 = vmatprep.subr.mxu0 0.0
    %481 = vmatpush1.msra.mxu0 0.0
    %482 = vmatprep.subr.mxu0 0.0
    %483 = vmatpush1.msra.mxu0 0.0
    %484 = vmatprep.subr.mxu0 0.0
    %485 = vmatpush1.msra.mxu0 0.0
    %486 = vmatprep.subr.mxu0 0.0
    %487 = vmatpush1.msra.mxu0 0.0
    %488 = vmatprep.subr.mxu0 0.0
    %489 = vmatpush1.msra.mxu0 0.0
    %490 = vmatprep.subr.mxu0 0.0
    %491 = vmatpush1.msra.mxu0 0.0
    %492 = vmatprep.subr.mxu0 0.0
    %493 = vmatpush1.msra.mxu0 0.0
    %494 = vmatprep.subr.mxu0 0.0
    %495 = vmatpush1.msra.mxu0 0.0
    %496 = vmatprep.subr.mxu0 0.0
    %497 = vmatpush1.msra.mxu0 %v453
    %498 = vmatprep.subr.mxu0 0.0
    %499 = vmatpush1.msra.mxu0 %v451
    %500 = vmatprep.subr.mxu0 0.0
    %501 = vmatpush2.msra.mxu0 0.0
    %502 = vmatprep.subr.mxu0 0.0
    %503 = vmatpush2.msra.mxu0 0.0
    %504 = vmatprep.subr.mxu0 0.0
    %505 = vmatpush2.msra.mxu0 0.0
    %506 = vmatprep.subr.mxu0 0.0
    %507 = vmatpush2.msra.mxu0 0.0
    %508 = vmatprep.subr.mxu0 0.0
    %509 = vmatpush2.msra.mxu0 0.0
    %510 = vmatprep.subr.mxu0 0.0
    %511 = vmatpush2.msra.mxu0 0.0
    %512 = vmatprep.subr.mxu0 0.0
    %513 = vmatpush2.msra.mxu0 0.0
    %514 = vmatprep.subr.mxu0 0.0
    %515 = vmatpush2.msra.mxu0 0.0
    %516 = vmatprep.subr.mxu0 0.0
    %517 = vmatpush2.msra.mxu0 0.0
    %518 = vmatprep.subr.mxu0 0.0
    %519 = vmatpush2.msra.mxu0 0.0
    %520 = vmatprep.subr.mxu0 0.0
    %521 = vmatpush2.msra.mxu0 0.0
    %522 = vmatprep.subr.mxu0 0.0
    %523 = vmatpush2.msra.mxu0 0.0
    %524 = vmatprep.subr.mxu0 0.0
    %525 = vmatpush2.msra.mxu0 0.0
    %526 = vmatprep.subr.mxu0 0.0
    %527 = vmatpush2.msra.mxu0 0.0
    %528 = vmatprep.subr.mxu0 0.0
    %529 = vmatpush2.msra.mxu0 0.0
    %530 = vmatprep.subr.mxu0 0.0
    %531 = vmatpush2.msra.mxu0 0.0
    %532 = vmatprep.mubr.f32.mxu0 0.0
    %533 = vmatmul.mubr.f32.gmra.mxu0 %v457
    %v534 = vpop.f32.mrf.mxu0
    %v535 = vadd.f32 0.0, %v534
    %v536 = vpop.f32.mrf.mxu0
    %537 = vmatprep.mubr.f32.mxu0 0.0
    %538 = vmatmul.mubr.f32.gmra.mxu0 %v460
    %v539 = vpop.f32.mrf.mxu0
    %v540 = vadd.f32 0.0, %v539
    %v541 = vpop.f32.mrf.mxu0
    %542 = vmatprep.mubr.f32.mxu0 0.0
    %543 = vmatmul.mubr.f32.gmra.mxu0 %v463
    %v544 = vpop.f32.mrf.mxu0
    %v545 = vadd.f32 0.0, %v544
    %v546 = vpop.f32.mrf.mxu0
    %547 = vmatprep.mubr.f32.mxu0 0.0
    %548 = vmatmul.mubr.f32.gmra.mxu0 %v466
    %v549 = vpop.f32.mrf.mxu0
    %v550 = vadd.f32 0.0, %v549
    %v551 = vpop.f32.mrf.mxu0
    %552 = vdwg.mxu0
    %v553 = vadd.f32 %v430, %v535
    %v554 = vadd.f32 %v435, %v540
    %v555 = vadd.f32 %v440, %v545
    %v556 = vadd.f32 %v445, %v550
    %vm557 = vcmp.gt.f32.partialorder %v553, 0.0
    %vm558 = vcmp.gt.f32.partialorder %v554, 0.0
    %vm559 = vcmp.gt.f32.partialorder %v555, 0.0
    %vm560 = vcmp.gt.f32.partialorder %v556, 0.0
    %v561 = vmul.f32 %v553, 0.01
    %v562 = vmul.f32 %v554, 0.01
    %v563 = vmul.f32 %v555, 0.01
    %v564 = vmul.f32 %v556, 0.01
    %v565 = vsel %vm557, %v553, %v561
    %v566 = vsel %vm558, %v554, %v562
    %v567 = vsel %vm559, %v555, %v563
    %v568 = vsel %vm560, %v556, %v564
    %569 = vst.msk [vmem:[#allocation8] sm:$0xff] %vm165, %v565
    %570 = vst.msk [vmem:[#allocation8 + $0x8] sm:$0xff] %vm165, %v566
    %571 = vst.msk [vmem:[#allocation8 + $0x10] sm:$0xff] %vm165, %v567
    %572 = vst.msk [vmem:[#allocation8 + $0x18] sm:$0xff] %vm165, %v568
    %v573 = vld [vmem:[%s8] sm:$0xff]
    %v574 = vld [vmem:[%s8 + $0x8] sm:$0xff]
    %v575 = vld [vmem:[%s8 + $0x10] sm:$0xff]
    %v576 = vld [vmem:[%s8 + $0x18] sm:$0xff]
    %v578 = vsel %vm165, %v565, 0
    %v581 = vsel %vm165, %v566, 0
    %v584 = vsel %vm165, %v567, 0
    %v587 = vsel %vm165, %v568, 0
    %589 = vmatprep.subr.mxu0 0.0
    %590 = vmatpush1.msra.mxu0 0.0
    %591 = vmatprep.subr.mxu0 0.0
    %592 = vmatpush1.msra.mxu0 0.0
    %593 = vmatprep.subr.mxu0 0.0
    %594 = vmatpush1.msra.mxu0 0.0
    %595 = vmatprep.subr.mxu0 0.0
    %596 = vmatpush1.msra.mxu0 0.0
    %597 = vmatprep.subr.mxu0 0.0
    %598 = vmatpush1.msra.mxu0 0.0
    %599 = vmatprep.subr.mxu0 0.0
    %600 = vmatpush1.msra.mxu0 0.0
    %601 = vmatprep.subr.mxu0 0.0
    %602 = vmatpush1.msra.mxu0 0.0
    %603 = vmatprep.subr.mxu0 0.0
    %604 = vmatpush1.msra.mxu0 0.0
    %605 = vmatprep.subr.mxu0 0.0
    %606 = vmatpush1.msra.mxu0 0.0
    %607 = vmatprep.subr.mxu0 0.0
    %608 = vmatpush1.msra.mxu0 0.0
    %609 = vmatprep.subr.mxu0 0.0
    %610 = vmatpush1.msra.mxu0 0.0
    %611 = vmatprep.subr.mxu0 0.0
    %612 = vmatpush1.msra.mxu0 0.0
    %613 = vmatprep.subr.mxu0 0.0
    %614 = vmatpush1.msra.mxu0 %v576
    %615 = vmatprep.subr.mxu0 0.0
    %616 = vmatpush1.msra.mxu0 %v575
    %617 = vmatprep.subr.mxu0 0.0
    %618 = vmatpush1.msra.mxu0 %v574
    %619 = vmatprep.subr.mxu0 0.0
    %620 = vmatpush1.msra.mxu0 %v573
    %621 = vmatprep.subr.mxu0 0.0
    %622 = vmatpush2.msra.mxu0 0.0
    %623 = vmatprep.subr.mxu0 0.0
    %624 = vmatpush2.msra.mxu0 0.0
    %625 = vmatprep.subr.mxu0 0.0
    %626 = vmatpush2.msra.mxu0 0.0
    %627 = vmatprep.subr.mxu0 0.0
    %628 = vmatpush2.msra.mxu0 0.0
    %629 = vmatprep.subr.mxu0 0.0
    %630 = vmatpush2.msra.mxu0 0.0
    %631 = vmatprep.subr.mxu0 0.0
    %632 = vmatpush2.msra.mxu0 0.0
    %633 = vmatprep.subr.mxu0 0.0
    %634 = vmatpush2.msra.mxu0 0.0
    %635 = vmatprep.subr.mxu0 0.0
    %636 = vmatpush2.msra.mxu0 0.0
    %637 = vmatprep.subr.mxu0 0.0
    %638 = vmatpush2.msra.mxu0 0.0
    %639 = vmatprep.subr.mxu0 0.0
    %640 = vmatpush2.msra.mxu0 0.0
    %641 = vmatprep.subr.mxu0 0.0
    %642 = vmatpush2.msra.mxu0 0.0
    %643 = vmatprep.subr.mxu0 0.0
    %644 = vmatpush2.msra.mxu0 0.0
    %645 = vmatprep.subr.mxu0 0.0
    %646 = vmatpush2.msra.mxu0 0.0
    %647 = vmatprep.subr.mxu0 0.0
    %648 = vmatpush2.msra.mxu0 0.0
    %649 = vmatprep.subr.mxu0 0.0
    %650 = vmatpush2.msra.mxu0 0.0
    %651 = vmatprep.subr.mxu0 0.0
    %652 = vmatpush2.msra.mxu0 0.0
    %653 = vmatprep.mubr.f32.mxu0 0.0
    %654 = vmatmul.mubr.f32.gmra.mxu0 %v578
    %v655 = vpop.f32.mrf.mxu0
    %v656 = vadd.f32 0.0, %v655
    %v657 = vpop.f32.mrf.mxu0
    %658 = vmatprep.mubr.f32.mxu0 0.0
    %659 = vmatmul.mubr.f32.gmra.mxu0 %v581
    %v660 = vpop.f32.mrf.mxu0
    %v661 = vadd.f32 0.0, %v660
    %v662 = vpop.f32.mrf.mxu0
    %663 = vmatprep.mubr.f32.mxu0 0.0
    %664 = vmatmul.mubr.f32.gmra.mxu0 %v584
    %v665 = vpop.f32.mrf.mxu0
    %v666 = vadd.f32 0.0, %v665
    %v667 = vpop.f32.mrf.mxu0
    %668 = vmatprep.mubr.f32.mxu0 0.0
    %669 = vmatmul.mubr.f32.gmra.mxu0 %v587
    %v670 = vpop.f32.mrf.mxu0
    %v671 = vadd.f32 0.0, %v670
    %v672 = vpop.f32.mrf.mxu0
    %673 = vdwg.mxu0
    %v674 = vmax.f32 %v656, %v661
    %v675 = vmax.f32 %v666, %v671
    %v676 = vmax.f32 %v674, %v675
    %v677 = vrot.slane %v676, 4
    %v678 = vmax.f32 %v676, %v677
    %v679 = vrot.slane %v678, 2
    %v680 = vmax.f32 %v678, %v679
    %v681 = vrot.slane %v680, 1
    %v682 = vmax.f32 %v680, %v681
    %v683 = vsub.f32 %v656, %v682
    %v684 = vsub.f32 %v661, %v682
    %v685 = vsub.f32 %v666, %v682
    %v686 = vsub.f32 %v671, %v682
    %v687 = vmul.f32 %v683, 1.442695
    %v688 = vpow.pop %v687
    %v689 = vmul.f32 %v684, 1.442695
    %v690 = vpow.pop %v689
    %v691 = vmul.f32 %v685, 1.442695
    %v692 = vpow.pop %v691
    %v693 = vmul.f32 %v686, 1.442695
    %v694 = vpow.pop %v693
    %v696 = vsel %vm165, %v92, 0
    %v699 = vsel %vm165, %v93, 0
    %701 = vmatprep.subr.mxu0 0.0
    %702 = vmatpush1.msra.mxu0 0.0
    %703 = vmatprep.subr.mxu0 0.0
    %704 = vmatpush1.msra.mxu0 0.0
    %705 = vmatprep.subr.mxu0 0.0
    %706 = vmatpush1.msra.mxu0 0.0
    %707 = vmatprep.subr.mxu0 0.0
    %708 = vmatpush1.msra.mxu0 0.0
    %709 = vmatprep.subr.mxu0 0.0
    %710 = vmatpush1.msra.mxu0 0.0
    %711 = vmatprep.subr.mxu0 0.0
    %712 = vmatpush1.msra.mxu0 0.0
    %713 = vmatprep.subr.mxu0 0.0
    %714 = vmatpush1.msra.mxu0 0.0
    %715 = vmatprep.subr.mxu0 0.0
    %716 = vmatpush1.msra.mxu0 0.0
    %717 = vmatprep.subr.mxu0 0.0
    %718 = vmatpush1.msra.mxu0 0.0
    %719 = vmatprep.subr.mxu0 0.0
    %720 = vmatpush1.msra.mxu0 0.0
    %721 = vmatprep.subr.mxu0 0.0
    %722 = vmatpush1.msra.mxu0 0.0
    %723 = vmatprep.subr.mxu0 0.0
    %724 = vmatpush1.msra.mxu0 0.0
    %725 = vmatprep.subr.mxu0 0.0
    %726 = vmatpush1.msra.mxu0 %v694
    %727 = vmatprep.subr.mxu0 0.0
    %728 = vmatpush1.msra.mxu0 %v692
    %729 = vmatprep.subr.mxu0 0.0
    %730 = vmatpush1.msra.mxu0 %v690
    %731 = vmatprep.subr.mxu0 0.0
    %732 = vmatpush1.msra.mxu0 %v688
    %733 = vmatprep.subr.mxu0 0.0
    %734 = vmatpush2.msra.mxu0 0.0
    %735 = vmatprep.subr.mxu0 0.0
    %736 = vmatpush2.msra.mxu0 0.0
    %737 = vmatprep.subr.mxu0 0.0
    %738 = vmatpush2.msra.mxu0 0.0
    %739 = vmatprep.subr.mxu0 0.0
    %740 = vmatpush2.msra.mxu0 0.0
    %741 = vmatprep.subr.mxu0 0.0
    %742 = vmatpush2.msra.mxu0 0.0
    %743 = vmatprep.subr.mxu0 0.0
    %744 = vmatpush2.msra.mxu0 0.0
    %745 = vmatprep.subr.mxu0 0.0
    %746 = vmatpush2.msra.mxu0 0.0
    %747 = vmatprep.subr.mxu0 0.0
    %748 = vmatpush2.msra.mxu0 0.0
    %749 = vmatprep.subr.mxu0 0.0
    %750 = vmatpush2.msra.mxu0 0.0
    %751 = vmatprep.subr.mxu0 0.0
    %752 = vmatpush2.msra.mxu0 0.0
    %753 = vmatprep.subr.mxu0 0.0
    %754 = vmatpush2.msra.mxu0 0.0
    %755 = vmatprep.subr.mxu0 0.0
    %756 = vmatpush2.msra.mxu0 0.0
    %757 = vmatprep.subr.mxu0 0.0
    %758 = vmatpush2.msra.mxu0 0.0
    %759 = vmatprep.subr.mxu0 0.0
    %760 = vmatpush2.msra.mxu0 0.0
    %761 = vmatprep.subr.mxu0 0.0
    %762 = vmatpush2.msra.mxu0 0.0
    %763 = vmatprep.subr.mxu0 0.0
    %764 = vmatpush2.msra.mxu0 0.0
    %765 = vmatprep.mubr.f32.mxu0 0.0
    %766 = vmatmul.mubr.f32.gmra.mxu0 %v696
    %v767 = vpop.f32.mrf.mxu0
    %v768 = vadd.f32 0.0, %v767
    %v769 = vpop.f32.mrf.mxu0
    %770 = vmatprep.mubr.f32.mxu0 0.0
    %771 = vmatmul.mubr.f32.gmra.mxu0 %v699
    %v772 = vpop.f32.mrf.mxu0
    %v773 = vadd.f32 0.0, %v772
    %v774 = vpop.f32.mrf.mxu0
    %775 = vdwg.mxu0
    %776 = vmatprep.subr.mxu0 0.0
    %777 = vmatpush1.msra.mxu0 0.0
    %778 = vmatprep.subr.mxu0 0.0
    %779 = vmatpush1.msra.mxu0 0.0
    %780 = vmatprep.subr.mxu0 0.0
    %781 = vmatpush1.msra.mxu0 0.0
    %782 = vmatprep.subr.mxu0 0.0
    %783 = vmatpush1.msra.mxu0 0.0
    %784 = vmatprep.subr.mxu0 0.0
    %785 = vmatpush1.msra.mxu0 0.0
    %786 = vmatprep.subr.mxu0 0.0
    %787 = vmatpush1.msra.mxu0 0.0
    %788 = vmatprep.subr.mxu0 0.0
    %789 = vmatpush1.msra.mxu0 0.0
    %790 = vmatprep.subr.mxu0 0.0
    %791 = vmatpush1.msra.mxu0 0.0
    %792 = vmatprep.subr.mxu0 0.0
    %793 = vmatpush1.msra.mxu0 0.0
    %794 = vmatprep.subr.mxu0 0.0
    %795 = vmatpush1.msra.mxu0 0.0
    %796 = vmatprep.subr.mxu0 0.0
    %797 = vmatpush1.msra.mxu0 0.0
    %798 = vmatprep.subr.mxu0 0.0
    %799 = vmatpush1.msra.mxu0 0.0
    %800 = vmatprep.subr.mxu0 0.0
    %801 = vmatpush1.msra.mxu0 0.0
    %802 = vmatprep.subr.mxu0 0.0
    %803 = vmatpush1.msra.mxu0 0.0
    %804 = vmatprep.subr.mxu0 0.0
    %805 = vmatpush1.msra.mxu0 %v773
    %806 = vmatprep.subr.mxu0 0.0
    %807 = vmatpush1.msra.mxu0 %v768
    %808 = vmatprep.subr.mxu0 0.0
    %809 = vmatpush2.msra.mxu0 0.0
    %810 = vmatprep.subr.mxu0 0.0
    %811 = vmatpush2.msra.mxu0 0.0
    %812 = vmatprep.subr.mxu0 0.0
    %813 = vmatpush2.msra.mxu0 0.0
    %814 = vmatprep.subr.mxu0 0.0
    %815 = vmatpush2.msra.mxu0 0.0
    %816 = vmatprep.subr.mxu0 0.0
    %817 = vmatpush2.msra.mxu0 0.0
    %818 = vmatprep.subr.mxu0 0.0
    %819 = vmatpush2.msra.mxu0 0.0
    %820 = vmatprep.subr.mxu0 0.0
    %821 = vmatpush2.msra.mxu0 0.0
    %822 = vmatprep.subr.mxu0 0.0
    %823 = vmatpush2.msra.mxu0 0.0
    %824 = vmatprep.subr.mxu0 0.0
    %825 = vmatpush2.msra.mxu0 0.0
    %826 = vmatprep.subr.mxu0 0.0
    %827 = vmatpush2.msra.mxu0 0.0
    %828 = vmatprep.subr.mxu0 0.0
    %829 = vmatpush2.msra.mxu0 0.0
    %830 = vmatprep.subr.mxu0 0.0
    %831 = vmatpush2.msra.mxu0 0.0
    %832 = vmatprep.subr.mxu0 0.0
    %833 = vmatpush2.msra.mxu0 0.0
    %834 = vmatprep.subr.mxu0 0.0
    %835 = vmatpush2.msra.mxu0 0.0
    %836 = vmatprep.subr.mxu0 0.0
    %837 = vmatpush2.msra.mxu0 0.0
    %838 = vmatprep.subr.mxu0 0.0
    %839 = vmatpush2.msra.mxu0 0.0
    %840 = vmatprep.mubr.f32.mxu0 0.0
    %841 = vmatmul.mubr.f32.gmra.mxu0 %v255
    %v842 = vpop.f32.mrf.mxu0
    %v843 = vadd.f32 0.0, %v842
    %v844 = vpop.f32.mrf.mxu0
    %845 = vmatprep.mubr.f32.mxu0 0.0
    %846 = vmatmul.mubr.f32.gmra.mxu0 %v258
    %v847 = vpop.f32.mrf.mxu0
    %v848 = vadd.f32 0.0, %v847
    %v849 = vpop.f32.mrf.mxu0
    %850 = vmatprep.mubr.f32.mxu0 0.0
    %851 = vmatmul.mubr.f32.gmra.mxu0 %v261
    %v852 = vpop.f32.mrf.mxu0
    %v853 = vadd.f32 0.0, %v852
    %v854 = vpop.f32.mrf.mxu0
    %855 = vmatprep.mubr.f32.mxu0 0.0
    %856 = vmatmul.mubr.f32.gmra.mxu0 %v264
    %v857 = vpop.f32.mrf.mxu0
    %v858 = vadd.f32 0.0, %v857
    %v859 = vpop.f32.mrf.mxu0
    %860 = vdwg.mxu0
    %v861 = vrcp.pop %v843
    %v862 = vrcp.pop %v848
    %v863 = vrcp.pop %v853
    %v864 = vrcp.pop %v858
    %v865 = vmul.f32 %v688, %v861
    %v866 = vmul.f32 %v690, %v862
    %v867 = vmul.f32 %v692, %v863
    %v868 = vmul.f32 %v694, %v864
    %873 = vrot.lane.b32.xlu0 %v865, 96
    %v874 = vpop.permute.xlu0 %873
    %875 = vrot.lane.b32.xlu0 %v866, 96
    %v876 = vpop.permute.xlu0 %875
    %877 = vrot.lane.b32.xlu0 %v867, 96
    %v878 = vpop.permute.xlu0 %877
    %879 = vrot.lane.b32.xlu0 %v868, 96
    %v880 = vpop.permute.xlu0 %879
    %v885 = vadd.f32 %v865, %v874
    %v886 = vadd.f32 %v866, %v876
    %v887 = vadd.f32 %v867, %v878
    %v888 = vadd.f32 %v868, %v880
    %889 = vrot.lane.b32.xlu0 %v865, 64
    %v890 = vpop.permute.xlu0 %889
    %891 = vrot.lane.b32.xlu0 %v866, 64
    %v892 = vpop.permute.xlu0 %891
    %893 = vrot.lane.b32.xlu0 %v867, 64
    %v894 = vpop.permute.xlu0 %893
    %895 = vrot.lane.b32.xlu0 %v868, 64
    %v896 = vpop.permute.xlu0 %895
    %v901 = vadd.f32 %v885, %v890
    %v902 = vadd.f32 %v886, %v892
    %v903 = vadd.f32 %v887, %v894
    %v904 = vadd.f32 %v888, %v896
    %905 = vrot.lane.b32.xlu0 %v865, 32
    %v906 = vpop.permute.xlu0 %905
    %907 = vrot.lane.b32.xlu0 %v866, 32
    %v908 = vpop.permute.xlu0 %907
    %909 = vrot.lane.b32.xlu0 %v867, 32
    %v910 = vpop.permute.xlu0 %909
    %911 = vrot.lane.b32.xlu0 %v868, 32
    %v912 = vpop.permute.xlu0 %911
    %v917 = vadd.f32 %v901, %v906
    %v918 = vadd.f32 %v902, %v908
    %v919 = vadd.f32 %v903, %v910
    %v920 = vadd.f32 %v904, %v912
    %v921 = vmul.f32 %v917, %v565
    %v922 = vmul.f32 %v918, %v566
    %v923 = vmul.f32 %v919, %v567
    %v924 = vmul.f32 %v920, %v568
    %v926 = vsel %vm165, %v103, 0
    %v929 = vsel %vm165, %v104, 0
    %931 = vmatprep.subr.mxu0 0.0
    %932 = vmatpush1.msra.mxu0 0.0
    %933 = vmatprep.subr.mxu0 0.0
    %934 = vmatpush1.msra.mxu0 0.0
    %935 = vmatprep.subr.mxu0 0.0
    %936 = vmatpush1.msra.mxu0 0.0
    %937 = vmatprep.subr.mxu0 0.0
    %938 = vmatpush1.msra.mxu0 0.0
    %939 = vmatprep.subr.mxu0 0.0
    %940 = vmatpush1.msra.mxu0 0.0
    %941 = vmatprep.subr.mxu0 0.0
    %942 = vmatpush1.msra.mxu0 0.0
    %943 = vmatprep.subr.mxu0 0.0
    %944 = vmatpush1.msra.mxu0 0.0
    %945 = vmatprep.subr.mxu0 0.0
    %946 = vmatpush1.msra.mxu0 0.0
    %947 = vmatprep.subr.mxu0 0.0
    %948 = vmatpush1.msra.mxu0 0.0
    %949 = vmatprep.subr.mxu0 0.0
    %950 = vmatpush1.msra.mxu0 0.0
    %951 = vmatprep.subr.mxu0 0.0
    %952 = vmatpush1.msra.mxu0 0.0
    %953 = vmatprep.subr.mxu0 0.0
    %954 = vmatpush1.msra.mxu0 0.0
    %955 = vmatprep.subr.mxu0 0.0
    %956 = vmatpush1.msra.mxu0 %v924
    %957 = vmatprep.subr.mxu0 0.0
    %958 = vmatpush1.msra.mxu0 %v923
    %959 = vmatprep.subr.mxu0 0.0
    %960 = vmatpush1.msra.mxu0 %v922
    %961 = vmatprep.subr.mxu0 0.0
    %962 = vmatpush1.msra.mxu0 %v921
    %963 = vmatprep.subr.mxu0 0.0
    %964 = vmatpush2.msra.mxu0 0.0
    %965 = vmatprep.subr.mxu0 0.0
    %966 = vmatpush2.msra.mxu0 0.0
    %967 = vmatprep.subr.mxu0 0.0
    %968 = vmatpush2.msra.mxu0 0.0
    %969 = vmatprep.subr.mxu0 0.0
    %970 = vmatpush2.msra.mxu0 0.0
    %971 = vmatprep.subr.mxu0 0.0
    %972 = vmatpush2.msra.mxu0 0.0
    %973 = vmatprep.subr.mxu0 0.0
    %974 = vmatpush2.msra.mxu0 0.0
    %975 = vmatprep.subr.mxu0 0.0
    %976 = vmatpush2.msra.mxu0 0.0
    %977 = vmatprep.subr.mxu0 0.0
    %978 = vmatpush2.msra.mxu0 0.0
    %979 = vmatprep.subr.mxu0 0.0
    %980 = vmatpush2.msra.mxu0 0.0
    %981 = vmatprep.subr.mxu0 0.0
    %982 = vmatpush2.msra.mxu0 0.0
    %983 = vmatprep.subr.mxu0 0.0
    %984 = vmatpush2.msra.mxu0 0.0
    %985 = vmatprep.subr.mxu0 0.0
    %986 = vmatpush2.msra.mxu0 0.0
    %987 = vmatprep.subr.mxu0 0.0
    %988 = vmatpush2.msra.mxu0 0.0
    %989 = vmatprep.subr.mxu0 0.0
    %990 = vmatpush2.msra.mxu0 0.0
    %991 = vmatprep.subr.mxu0 0.0
    %992 = vmatpush2.msra.mxu0 0.0
    %993 = vmatprep.subr.mxu0 0.0
    %994 = vmatpush2.msra.mxu0 0.0
    %995 = vmatprep.mubr.f32.mxu0 0.0
    %996 = vmatmul.mubr.f32.gmra.mxu0 %v926
    %v997 = vpop.f32.mrf.mxu0
    %v998 = vadd.f32 0.0, %v997
    %v999 = vpop.f32.mrf.mxu0
    %1000 = vmatprep.mubr.f32.mxu0 0.0
    %1001 = vmatmul.mubr.f32.gmra.mxu0 %v929
    %v1002 = vpop.f32.mrf.mxu0
    %v1003 = vadd.f32 0.0, %v1002
    %v1004 = vpop.f32.mrf.mxu0
    %1005 = vdwg.mxu0
    %v1006 = vmul.f32 %v998, 0.25
    %v1007 = vmul.f32 %v1003, 0.25
    %v1008 = vld [vmem:[%s9] sm:$0xff]
    %v1009 = vld [vmem:[%s9 + $0x8] sm:$0xff]
    %v1010 = vld [vmem:[%s9 + $0x10] sm:$0xff]
    %v1011 = vld [vmem:[%s9 + $0x18] sm:$0xff]
    %v1012 = vld [vmem:[%s11] sm:$0x1]
    %v1014 = vlaneseq
    %v1015 = vshrl.u32 %v1014, 7
    %v1016 = vsub.s32 0, %v1015
    %v1017 = vrot.slane %v1012, %v1016
    %1019 = vmatprep.subr.mxu0 0.0
    %1020 = vmatpush1.msra.mxu0 0.0
    %1021 = vmatprep.subr.mxu0 0.0
    %1022 = vmatpush1.msra.mxu0 0.0
    %1023 = vmatprep.subr.mxu0 0.0
    %1024 = vmatpush1.msra.mxu0 0.0
    %1025 = vmatprep.subr.mxu0 0.0
    %1026 = vmatpush1.msra.mxu0 0.0
    %1027 = vmatprep.subr.mxu0 0.0
    %1028 = vmatpush1.msra.mxu0 0.0
    %1029 = vmatprep.subr.mxu0 0.0
    %1030 = vmatpush1.msra.mxu0 0.0
    %1031 = vmatprep.subr.mxu0 0.0
    %1032 = vmatpush1.msra.mxu0 0.0
    %1033 = vmatprep.subr.mxu0 0.0
    %1034 = vmatpush1.msra.mxu0 0.0
    %1035 = vmatprep.subr.mxu0 0.0
    %1036 = vmatpush1.msra.mxu0 0.0
    %1037 = vmatprep.subr.mxu0 0.0
    %1038 = vmatpush1.msra.mxu0 0.0
    %1039 = vmatprep.subr.mxu0 0.0
    %1040 = vmatpush1.msra.mxu0 0.0
    %1041 = vmatprep.subr.mxu0 0.0
    %1042 = vmatpush1.msra.mxu0 0.0
    %1043 = vmatprep.subr.mxu0 0.0
    %1044 = vmatpush1.msra.mxu0 %v1011
    %1045 = vmatprep.subr.mxu0 0.0
    %1046 = vmatpush1.msra.mxu0 %v1010
    %1047 = vmatprep.subr.mxu0 0.0
    %1048 = vmatpush1.msra.mxu0 %v1009
    %1049 = vmatprep.subr.mxu0 0.0
    %1050 = vmatpush1.msra.mxu0 %v1008
    %1051 = vmatprep.subr.mxu0 0.0
    %1052 = vmatpush2.msra.mxu0 0.0
    %1053 = vmatprep.subr.mxu0 0.0
    %1054 = vmatpush2.msra.mxu0 0.0
    %1055 = vmatprep.subr.mxu0 0.0
    %1056 = vmatpush2.msra.mxu0 0.0
    %1057 = vmatprep.subr.mxu0 0.0
    %1058 = vmatpush2.msra.mxu0 0.0
    %1059 = vmatprep.subr.mxu0 0.0
    %1060 = vmatpush2.msra.mxu0 0.0
    %1061 = vmatprep.subr.mxu0 0.0
    %1062 = vmatpush2.msra.mxu0 0.0
    %1063 = vmatprep.subr.mxu0 0.0
    %1064 = vmatpush2.msra.mxu0 0.0
    %1065 = vmatprep.subr.mxu0 0.0
    %1066 = vmatpush2.msra.mxu0 0.0
    %1067 = vmatprep.subr.mxu0 0.0
    %1068 = vmatpush2.msra.mxu0 0.0
    %1069 = vmatprep.subr.mxu0 0.0
    %1070 = vmatpush2.msra.mxu0 0.0
    %1071 = vmatprep.subr.mxu0 0.0
    %1072 = vmatpush2.msra.mxu0 0.0
    %1073 = vmatprep.subr.mxu0 0.0
    %1074 = vmatpush2.msra.mxu0 0.0
    %1075 = vmatprep.subr.mxu0 0.0
    %1076 = vmatpush2.msra.mxu0 0.0
    %1077 = vmatprep.subr.mxu0 0.0
    %1078 = vmatpush2.msra.mxu0 0.0
    %1079 = vmatprep.subr.mxu0 0.0
    %1080 = vmatpush2.msra.mxu0 0.0
    %1081 = vmatprep.subr.mxu0 0.0
    %1082 = vmatpush2.msra.mxu0 0.0
    %1083 = vmatprep.mubr.f32.mxu0 0.0
    %1084 = vmatmul.mubr.f32.gmra.mxu0 %v167
    %v1085 = vpop.f32.mrf.mxu0
    %v1086 = vadd.f32 %v1017, %v1085
    %v1087 = vpop.f32.mrf.mxu0
    %1088 = vmatprep.mubr.f32.mxu0 0.0
    %1089 = vmatmul.mubr.f32.gmra.mxu0 %v170
    %v1090 = vpop.f32.mrf.mxu0
    %v1091 = vadd.f32 %v1017, %v1090
    %v1092 = vpop.f32.mrf.mxu0
    %1093 = vdwg.mxu0
    %v1094 = vld [vmem:[%s10] sm:$0xff]
    %v1095 = vld [vmem:[%s10 + $0x8] sm:$0xff]
    %v1096 = vld [vmem:[%s10 + $0x10] sm:$0xff]
    %v1097 = vld [vmem:[%s10 + $0x18] sm:$0xff]
    %v1098 = vld [vmem:[%s12] sm:$0x1]
    %v1100 = vlaneseq
    %v1101 = vshrl.u32 %v1100, 7
    %v1102 = vsub.s32 0, %v1101
    %v1103 = vrot.slane %v1098, %v1102
    %v1106 = vsel %vm165, %v1006, 0
    %v1109 = vsel %vm165, %v1007, 0
    %1111 = vmatprep.subr.mxu0 0.0
    %1112 = vmatpush1.msra.mxu0 0.0
    %1113 = vmatprep.subr.mxu0 0.0
    %1114 = vmatpush1.msra.mxu0 0.0
    %1115 = vmatprep.subr.mxu0 0.0
    %1116 = vmatpush1.msra.mxu0 0.0
    %1117 = vmatprep.subr.mxu0 0.0
    %1118 = vmatpush1.msra.mxu0 0.0
    %1119 = vmatprep.subr.mxu0 0.0
    %1120 = vmatpush1.msra.mxu0 0.0
    %1121 = vmatprep.subr.mxu0 0.0
    %1122 = vmatpush1.msra.mxu0 0.0
    %1123 = vmatprep.subr.mxu0 0.0
    %1124 = vmatpush1.msra.mxu0 0.0
    %1125 = vmatprep.subr.mxu0 0.0
    %1126 = vmatpush1.msra.mxu0 0.0
    %1127 = vmatprep.subr.mxu0 0.0
    %1128 = vmatpush1.msra.mxu0 0.0
    %1129 = vmatprep.subr.mxu0 0.0
    %1130 = vmatpush1.msra.mxu0 0.0
    %1131 = vmatprep.subr.mxu0 0.0
    %1132 = vmatpush1.msra.mxu0 0.0
    %1133 = vmatprep.subr.mxu0 0.0
    %1134 = vmatpush1.msra.mxu0 0.0
    %1135 = vmatprep.subr.mxu0 0.0
    %1136 = vmatpush1.msra.mxu0 %v1097
    %1137 = vmatprep.subr.mxu0 0.0
    %1138 = vmatpush1.msra.mxu0 %v1096
    %1139 = vmatprep.subr.mxu0 0.0
    %1140 = vmatpush1.msra.mxu0 %v1095
    %1141 = vmatprep.subr.mxu0 0.0
    %1142 = vmatpush1.msra.mxu0 %v1094
    %1143 = vmatprep.subr.mxu0 0.0
    %1144 = vmatpush2.msra.mxu0 0.0
    %1145 = vmatprep.subr.mxu0 0.0
    %1146 = vmatpush2.msra.mxu0 0.0
    %1147 = vmatprep.subr.mxu0 0.0
    %1148 = vmatpush2.msra.mxu0 0.0
    %1149 = vmatprep.subr.mxu0 0.0
    %1150 = vmatpush2.msra.mxu0 0.0
    %1151 = vmatprep.subr.mxu0 0.0
    %1152 = vmatpush2.msra.mxu0 0.0
    %1153 = vmatprep.subr.mxu0 0.0
    %1154 = vmatpush2.msra.mxu0 0.0
    %1155 = vmatprep.subr.mxu0 0.0
    %1156 = vmatpush2.msra.mxu0 0.0
    %1157 = vmatprep.subr.mxu0 0.0
    %1158 = vmatpush2.msra.mxu0 0.0
    %1159 = vmatprep.subr.mxu0 0.0
    %1160 = vmatpush2.msra.mxu0 0.0
    %1161 = vmatprep.subr.mxu0 0.0
    %1162 = vmatpush2.msra.mxu0 0.0
    %1163 = vmatprep.subr.mxu0 0.0
    %1164 = vmatpush2.msra.mxu0 0.0
    %1165 = vmatprep.subr.mxu0 0.0
    %1166 = vmatpush2.msra.mxu0 0.0
    %1167 = vmatprep.subr.mxu0 0.0
    %1168 = vmatpush2.msra.mxu0 0.0
    %1169 = vmatprep.subr.mxu0 0.0
    %1170 = vmatpush2.msra.mxu0 0.0
    %1171 = vmatprep.subr.mxu0 0.0
    %1172 = vmatpush2.msra.mxu0 0.0
    %1173 = vmatprep.subr.mxu0 0.0
    %1174 = vmatpush2.msra.mxu0 0.0
    %1175 = vmatprep.mubr.f32.mxu0 0.0
    %1176 = vmatmul.mubr.f32.gmra.mxu0 %v1106
    %v1177 = vpop.f32.mrf.mxu0
    %v1178 = vadd.f32 %v1103, %v1177
    %v1179 = vpop.f32.mrf.mxu0
    %1180 = vmatprep.mubr.f32.mxu0 0.0
    %1181 = vmatmul.mubr.f32.gmra.mxu0 %v1109
    %v1182 = vpop.f32.mrf.mxu0
    %v1183 = vadd.f32 %v1103, %v1182
    %v1184 = vpop.f32.mrf.mxu0
    %1185 = vdwg.mxu0
    %v1186 = vadd.f32 %v1086, %v1178
    %v1187 = vadd.f32 %v1091, %v1183
    %v1188 = vxor.u32 %v1186, 2147483648
    %v1189 = vxor.u32 %v1187, 2147483648
    %v1190 = vmul.f32 %v1188, 1.442695
    %v1191 = vpow.pop %v1190
    %v1192 = vmul.f32 %v1189, 1.442695
    %v1193 = vpow.pop %v1192
    %v1194 = vadd.f32 %v1191, 1.0
    %v1195 = vadd.f32 %v1193, 1.0
    %v1196 = vrcp.pop %v1194
    %v1197 = vmul.f32 1.0, %v1196
    %v1198 = vrcp.pop %v1195
    %v1199 = vmul.f32 1.0, %v1198
    %1202 = vrot.lane.b32.xlu0 %v1178, 64
    %v1203 = vpop.permute.xlu0 %1202
    %1204 = vrot.lane.b32.xlu0 %v1183, 64
    %v1205 = vpop.permute.xlu0 %1204
    %v1208 = vmul.f32 %v1197, %v1203
    %v1209 = vmul.f32 %v1199, %v1205
    %1212 = vrot.lane.b32.xlu0 %v1208, 64
    %v1213 = vpop.permute.xlu0 %1212
    %1214 = vrot.lane.b32.xlu0 %v1209, 64
    %v1215 = vpop.permute.xlu0 %1214
    %v1218 = vadd.f32 %v1086, %v1213
    %v1219 = vadd.f32 %v1091, %v1215
    %v1220 = vtanh.pop %v1218
    %v1221 = vtanh.pop %v1219
    %v1222 = vsub.f32 1.0, %v1197
    %v1223 = vsub.f32 1.0, %v1199
    %1226 = vrot.lane.b32.xlu0 %v1220, 96
    %v1227 = vpop.permute.xlu0 %1226
    %1228 = vrot.lane.b32.xlu0 %v1221, 96
    %v1229 = vpop.permute.xlu0 %1228
    %v1232 = vmul.f32 %v1222, %v1227
    %v1233 = vmul.f32 %v1223, %v1229
    %1234 = vrot.lane.b32.xlu0 %v1006, 32
    %v1235 = vpop.permute.xlu0 %1234
    %1236 = vrot.lane.b32.xlu0 %v1007, 32
    %v1237 = vpop.permute.xlu0 %1236
    %v1240 = vmul.f32 %v1197, %v1235
    %v1241 = vmul.f32 %v1199, %v1237
    %v1242 = vadd.f32 %v1232, %v1240
    %v1243 = vadd.f32 %v1233, %v1241
    %1246 = vrot.lane.b32.xlu0 %v1242, 96
    %v1247 = vpop.permute.xlu0 %1246
    %1248 = vrot.lane.b32.xlu0 %v1243, 96
    %v1249 = vpop.permute.xlu0 %1248
    %1252 = vst.msk [vmem:[#allocation7] sm:$0xff] %vm165, %v1247
    %1253 = vst.msk [vmem:[#allocation7 + $0x8] sm:$0xff] %vm165, %v1249
    // Predicated region
    $region62: #{gnn_layer_forward.1} parent=1 // pred_check
      _
    $region63: #{gnn_layer_forward.1} parent=1 // pred_check_branch
      %1255 = sbr.rel (0) target = $region65
    $region64: #{gnn_layer_forward.1} parent=1 // pred_region
      %s1257 = ssub.s32 256, 256
      %1258 = vsyncadd [#allocation4], %s1257
      %s1259 = sshll.u32 [#allocation7], 4
      %s1260 = int_to_ptr.vmem [resolvable:$true] %s1259
      %1265 = dma.vmem_to_hbm [thread:$0]  %s1260, 256, %s13, [#allocation4], 128, 128, 8
    $region65: #{gnn_layer_forward.1} parent=1 // pred_fallthru
      _
    // Predicated region
    $region66: #{gnn_layer_forward.1} parent=1 // pred_check
      _
    $region67: #{gnn_layer_forward.1} parent=1 // pred_check_branch
      %1267 = sbr.rel (0) target = $region69
    $region68: #{gnn_layer_forward.1} parent=1 // pred_region
      %s1269 = ssub.s32 512, 512
      %1270 = vsyncadd [#allocation9], %s1269
      %s1271 = sshll.u32 [#allocation8], 4
      %s1272 = int_to_ptr.vmem [resolvable:$true] %s1271
      %1277 = dma.vmem_to_hbm [thread:$0]  %s1272, 512, %s14, [#allocation9], 128, 128, 8
    $region69: #{gnn_layer_forward.1} parent=1 // pred_fallthru
      _
    // Predicated region
    $region70: #{gnn_layer_forward.1} parent=1 // pred_check
      _
    $region71: #{gnn_layer_forward.1} parent=1 // pred_check_branch
      %1279 = sbr.rel (0) target = $region73
    $region72: #{gnn_layer_forward.1} parent=1 // pred_region
      %1280 = dma.done [#allocation4], 256
    $region73: #{gnn_layer_forward.1} parent=1 // pred_fallthru
      _
    // Predicated region
    $region74: #{gnn_layer_forward.1} parent=1 // pred_check
      _
    $region75: #{gnn_layer_forward.1} parent=1 // pred_check_branch
      %1282 = sbr.rel (0) target = $region77
    $region76: #{gnn_layer_forward.1} parent=1 // pred_region
      %1283 = dma.done [#allocation9], 512
    $region77: #{gnn_layer_forward.1} parent=1 // pred_fallthru
      _
    %1284 = vsyncpa [#allocation3], 1
    %1285 = vsyncpa [#allocation6], 1
    %1286 = vsyncpa [#allocation4], 1
    %1287 = vsyncpa [#allocation9], 1

</llo_original>
